<compile_context>
chip_gen: v7x
topology: tpu7x:2x2x1
jax: 0.10.0
libtpu: 0.0.40
codegen_flags: <defaults>
</compile_context>

<pallas_src>
import functools
import math

import jax
import jax.numpy as jnp
import numpy as np
from jax import lax
from jax.experimental import pallas as pl
from jax.experimental.pallas import tpu as pltpu


# ----------------------------------- kernel ----------------------------------------

def _slip_loss_kernel(img_r_ref, txt_r_ref, qa_r_ref, qb_r_ref,
                      img_c_ref, txt_c_ref, qa_c_ref, qb_c_ref,
                      out_ref,
                      m_img, l_img, m_txt, l_txt, m_a, l_a, m_b, l_b,
                      rarg_img, rarg_ssl,
                      *, batch):
    i = pl.program_id(0)          # row block   ("parallel")
    j = pl.program_id(1)          # column block ("arbitrary" / reduction)
    nj = pl.num_programs(1)
    TM = img_r_ref.shape[0]
    TN = img_c_ref.shape[0]

    f32 = jnp.float32
    BIG = jnp.int32(2 ** 30)
    NEG = jnp.float32(-1e9)

    # Inputs arrive pre-normalized bf16 with the CLIP scale folded into the
    # image embedding and sqrt(1/tau) folded into each SSL embedding, so there
    # is no per-tile normalization / scaling work here.
    img_r = img_r_ref[...]
    txt_r = txt_r_ref[...]
    qa_r = qa_r_ref[...]
    qb_r = qb_r_ref[...]
    img_c = img_c_ref[...]
    txt_c = txt_c_ref[...]
    qa_c = qa_c_ref[...]
    qb_c = qb_c_ref[...]

    def _nt(a, b):     # a @ b.T, bf16 operands, f32 accumulation on the MXU
        return lax.dot_general(a, b, (((1,), (1,)), ((), ())),
                               preferred_element_type=f32)

    # ---- hoisted iotas, reused for self-mask and argmax column indices. ------------
    row_ids = i * TM + lax.broadcasted_iota(jnp.int32, (TM, 1), 0)
    col_ids = j * TN + lax.broadcasted_iota(jnp.int32, (TM, TN), 1)

    # ---- six logits tiles; no BxB transpose, no post-matmul scaling. ---------------
    a_img = _nt(img_r, txt_c)                  # CLIP image->text (scale pre-folded)
    a_txt = _nt(txt_r, img_c)                  # CLIP text->image
    ab = _nt(qa_r, qb_c)                       # SSL, 1/tau pre-folded
    ba = _nt(qb_r, qa_c)
    aa = _nt(qa_r, qa_c)
    bb = _nt(qb_r, qb_c)

    # ---- self-mask only on tiles intersecting the diagonal. ------------------------
    row_lo = i * TM
    col_lo = j * TN
    diag_here = jnp.logical_and(row_lo < col_lo + TN, col_lo < row_lo + TM)

    def _mask_diag(ops):
        aa_, bb_ = ops
        sm = row_ids == col_ids                # (TM,1) == (TM,TN) -> (TM,TN)
        return jnp.where(sm, NEG, aa_), jnp.where(sm, NEG, bb_)

    aa, bb = lax.cond(diag_here, _mask_diag, lambda ops: ops, (aa, bb))

    # ---- per-row-block state, initialized on the first column block. ---------------
    @pl.when(j == 0)
    def _init():
        for m_ref in (m_img, m_txt, m_a, m_b):
            m_ref[...] = jnp.full_like(m_ref, -1e30)
        for l_ref in (l_img, l_txt, l_a, l_b):
            l_ref[...] = jnp.zeros_like(l_ref)
        rarg_img[...] = jnp.full_like(rarg_img, BIG)
        rarg_ssl[...] = jnp.full_like(rarg_ssl, BIG)

    # ---- row maxes: computed once per tile, shared by LSE and argmax paths. --------
    max_img = jnp.max(a_img, axis=-1, keepdims=True)
    max_txt = jnp.max(a_txt, axis=-1, keepdims=True)
    max_ab = jnp.max(ab, axis=-1, keepdims=True)
    max_aa = jnp.max(aa, axis=-1, keepdims=True)
    max_ba = jnp.max(ba, axis=-1, keepdims=True)
    max_bb = jnp.max(bb, axis=-1, keepdims=True)
    max_ssl_a = jnp.maximum(max_ab, max_aa)
    max_ssl_b = jnp.maximum(max_ba, max_bb)

    # ---- running first-occurrence argmax (torch.argmax convention). ----------------
    # The running max is exactly the (pre-update) online-LSE max, so no extra
    # rmax scratch buffers — compare against m_ref BEFORE the LSE update below.
    def _first_arg(tile, tmax, cols):
        return jnp.min(jnp.where(tile == tmax, cols, BIG),
                       axis=-1, keepdims=True)

    def _arg_update(m_ref, rarg_ref, blk_max, blk_arg):
        m_old = m_ref[...]
        take = jnp.logical_or(
            blk_max > m_old,
            jnp.logical_and(blk_max == m_old, blk_arg < rarg_ref[...]))
        rarg_ref[...] = jnp.where(take, blk_arg, rarg_ref[...])

    _arg_update(m_img, rarg_img, max_img, _first_arg(a_img, max_img, col_ids))
    _arg_update(m_a, rarg_ssl, max_ssl_a,
                jnp.minimum(_first_arg(ab, max_ssl_a, col_ids),
                            _first_arg(aa, max_ssl_a, col_ids + batch)))

    # ---- flash-style online logsumexp updates. --------------------------------------
    def _lse_update(m_ref, l_ref, blk_max, tiles):
        m_old = m_ref[...]
        m_new = jnp.maximum(m_old, blk_max)
        s = l_ref[...] * jnp.exp(m_old - m_new)
        for t in tiles:
            s = s + jnp.sum(jnp.exp(t - m_new), axis=-1, keepdims=True)
        m_ref[...] = m_new
        l_ref[...] = s

    _lse_update(m_img, l_img, max_img, (a_img,))
    _lse_update(m_txt, l_txt, max_txt, (a_txt,))
    _lse_update(m_a, l_a, max_ssl_a, (ab, aa))     # cat([ab, aa], axis=1)
    _lse_update(m_b, l_b, max_ssl_b, (ba, bb))     # cat([ba, bb], axis=1)

    # ---- finalize this row block on the last column block. --------------------------
    @pl.when(j == nj - 1)
    def _finalize():
        # Diagonals straight from the row-aligned embeddings: O(TM*D).
        # diag(ba)==diag(ab), diag(per_text)==diag(per_image).
        diag_clip = jnp.sum(img_r.astype(f32) * txt_r.astype(f32),
                            axis=-1, keepdims=True)
        diag_ssl = jnp.sum(qa_r.astype(f32) * qb_r.astype(f32),
                           axis=-1, keepdims=True)

        ce_img = jnp.sum(m_img[...] + jnp.log(l_img[...]) - diag_clip)
        ce_txt = jnp.sum(m_txt[...] + jnp.log(l_txt[...]) - diag_clip)
        ssl_a = jnp.sum(m_a[...] + jnp.log(l_a[...]) - diag_ssl)
        ssl_b = jnp.sum(m_b[...] + jnp.log(l_b[...]) - diag_ssl)
        clip_hit = jnp.sum((rarg_img[...] == row_ids).astype(f32))
        ssl_hit = jnp.sum((rarg_ssl[...] == row_ids).astype(f32))

        # Single lane-dense (1,1,128) store instead of several tiny outputs.
        lane = lax.broadcasted_iota(jnp.int32, (1, 1, 128), 2)
        out_ref[...] = (jnp.where(lane == 0, ce_img, 0.0)
                        + jnp.where(lane == 1, ce_txt, 0.0)
                        + jnp.where(lane == 2, clip_hit, 0.0)
                        + jnp.where(lane == 3, ssl_a, 0.0)
                        + jnp.where(lane == 4, ssl_b, 0.0)
                        + jnp.where(lane == 5, ssl_hit, 0.0))


# ---------------------------------- wrapper -----------------------------------------

def _pick_tile(target, n):
    """Largest divisor of n <= target, preferring multiples of 128, then 8."""
    target = max(1, min(target, n))
    for pref in (128, 8, 1):
        for cand in range(target, 0, -1):
            if n % cand == 0 and cand % pref == 0:
                return cand
    return n
    # TODO(synk): for large B with awkward divisors, pad B to a 128-multiple and
    # mask padded rows/cols instead of falling back to tiny tiles.


def slip_loss(image_embed, text_embed, logit_scale, aug1_embed, aug2_embed,
              *, ssl_temperature=0.1, ssl_scale=1.0,
              block_rows=512, block_cols=256):
    """Same dict of scalars as SLIPLoss.forward (single device, labels=arange(B))."""
    B, D = image_embed.shape
    D_ssl = aug1_embed.shape[-1]

    TM = _pick_tile(block_rows, B)
    # Prefer >=2 row blocks (the "parallel" axis) so v7x's two TensorCores both
    # get work; only when each half keeps a decent MXU M-shape, since it costs
    # one extra column re-fetch on single-TC chips.
    if TM == B and B >= 256:
        TM = _pick_tile(B // 2, B)
    TN = _pick_tile(block_cols, B)
    gi, gj = B // TM, B // TN

    # ---- normalize once, fold scales, quantize to bf16 (halves HBM traffic). -------
    f32 = jnp.float32

    def _norm(x):
        x = x.astype(f32)
        ssq = jnp.sum(x * x, axis=-1, keepdims=True)
        return x * lax.rsqrt(jnp.maximum(ssq, 1e-24))   # == x / max(||x||_2, 1e-12)

    scale = jnp.asarray(logit_scale, dtype=f32).reshape(())
    sqrt_inv_tau = float(math.sqrt(1.0 / ssl_temperature))
    # scale folded into img only -> appears exactly once in every CLIP product
    # (img@txt.T, txt@img.T) and in diag(img*txt).  sqrt(1/tau) folded into BOTH
    # SSL embeddings -> every SSL product (ab, ba, aa, bb, diag) gets 1/tau.
    img_n = (_norm(image_embed) * scale).astype(jnp.bfloat16)
    txt_n = _norm(text_embed).astype(jnp.bfloat16)
    qa_n = (_norm(aug1_embed) * sqrt_inv_tau).astype(jnp.bfloat16)
    qb_n = (_norm(aug2_embed) * sqrt_inv_tau).astype(jnp.bfloat16)

    kernel = functools.partial(_slip_loss_kernel, batch=B)

    def _row(d):
        return pl.BlockSpec((TM, d), lambda i, j: (i, 0))

    def _col(d):
        # If DMA is still exposed on v6e, add pipeline_mode=pl.Buffered(3) here.
        return pl.BlockSpec((TN, d), lambda i, j: (j, 0))

    # CostEstimate: column blocks are re-fetched once per row block (gi times).
    bf16_in_bytes = 2 * B * (2 * D + 2 * D_ssl)
    cost = pl.CostEstimate(
        flops=int(4 * B * B * (D + 2 * D_ssl)),
        transcendentals=int(6 * B * B),
        bytes_accessed=int(bf16_in_bytes * (1 + gi) + gi * 128 * 4))

    partials = pl.pallas_call(
        kernel,
        out_shape=jax.ShapeDtypeStruct((gi, 1, 128), jnp.float32),
        grid=(gi, gj),
        in_specs=[
            _row(D), _row(D), _row(D_ssl), _row(D_ssl),          # row blocks
            _col(D), _col(D), _col(D_ssl), _col(D_ssl),          # column blocks
        ],
        out_specs=pl.BlockSpec((1, 1, 128), lambda i, j: (i, 0, 0)),
        scratch_shapes=(
            [pltpu.VMEM((TM, 1), jnp.float32) for _ in range(8)]   # m/l x 4 streams
            + [pltpu.VMEM((TM, 1), jnp.int32) for _ in range(2)]), # running argmax
        compiler_params=pltpu.CompilerParams(
            dimension_semantics=("parallel", "arbitrary"),
            vmem_limit_bytes=48 * 1024 * 1024),                    # safe on v5e/v6e/v7x
        cost_estimate=cost,
    )(img_n, txt_n, qa_n, qb_n,        # row views
      img_n, txt_n, qa_n, qb_n)        # column views (same bf16 arrays)

    parts = jnp.sum(partials[..., :6], axis=(0, 1))        # (6,) per-row-block sums
    inv_b = 1.0 / B
    clip_loss = 0.5 * (parts[0] + parts[1]) * inv_b
    clip_acc = 100.0 * parts[2] * inv_b
    ssl_loss = 0.5 * (parts[3] + parts[4]) * inv_b
    ssl_acc = 100.0 * parts[5] * inv_b
    return {'loss': clip_loss + ssl_scale * ssl_loss,
            'clip_loss': clip_loss, 'clip_acc': clip_acc,
            'ssl_loss': ssl_loss, 'ssl_acc': ssl_acc}


# ------------------------------ pure-JAX reference -----------------------------------

def _reference(image_embed, text_embed, logit_scale, a, b, tau, ssl_scale):
    """Pure-JAX reference mirroring the kernel's intentional mixed precision
    (normalize + fold scales in f32, quantize operands to bf16, f32 matmul
    accumulation) so the comparison tolerance can stay tight."""
    B = image_embed.shape[0]
    labels = jnp.arange(B)
    f32 = jnp.float32

    def norm(x):
        x = x.astype(f32)
        ssq = jnp.sum(x * x, axis=-1, keepdims=True)
        return x * lax.rsqrt(jnp.maximum(ssq, 1e-24))

    s = float(math.sqrt(1.0 / tau))
    img = (norm(image_embed) * jnp.asarray(logit_scale, f32)).astype(jnp.bfloat16).astype(f32)
    txt = norm(text_embed).astype(jnp.bfloat16).astype(f32)
    qa = (norm(a) * s).astype(jnp.bfloat16).astype(f32)
    qb = (norm(b) * s).astype(jnp.bfloat16).astype(f32)

    def ce(logits):
        return jnp.mean(jax.nn.logsumexp(logits, axis=-1)
                        - logits[jnp.arange(logits.shape[0]), labels])

    l_i = img @ txt.T
    l_t = txt @ img.T
    clip_loss = 0.5 * (ce(l_i) + ce(l_t))
    clip_acc = 100.0 * jnp.mean((jnp.argmax(l_i, -1) == labels).astype(f32))

    eye = jnp.eye(B, dtype=bool)
    laa = jnp.where(eye, f32(-1e9), qa @ qa.T)
    lbb = jnp.where(eye, f32(-1e9), qb @ qb.T)
    lab = qa @ qb.T
    lba = qb @ qa.T
    ssl_loss = 0.5 * (ce(jnp.concatenate([lab, laa], 1))
                      + ce(jnp.concatenate([lba, lbb], 1)))
    ssl_acc = 100.0 * jnp.mean(
        (jnp.argmax(jnp.concatenate([lab, laa], 1), -1) == labels).astype(f32))
    return {'loss': clip_loss + ssl_scale * ssl_loss, 'clip_loss': clip_loss,
            'clip_acc': clip_acc, 'ssl_loss': ssl_loss, 'ssl_acc': ssl_acc}


if __name__ == "__main__":
    B, D, D_SSL = 8, 32, 32          # small shapes consistent with the forward pass
    SSL_TEMPERATURE = 0.1            # SIMCLRLoss default
    SSL_SCALE = 1.0                  # SLIPLoss ctor arg (deterministic, in-script)

    key = jax.random.PRNGKey(0)
    k1, k2, k3, k4 = jax.random.split(key, 4)
    image_embed = jax.random.normal(k1, (B, D), dtype=jnp.float32)
    text_embed = jax.random.normal(k2, (B, D), dtype=jnp.float32)
    aug1_embed = jax.random.normal(k3, (B, D_SSL), dtype=jnp.float32)
    aug2_embed = jax.random.normal(k4, (B, D_SSL), dtype=jnp.float32)
    logit_scale = jnp.exp(jnp.float32(np.log(1.0 / 0.07)))   # CLIP-style learned scale

    out = slip_loss(image_embed, text_embed, logit_scale, aug1_embed, aug2_embed,
                    ssl_temperature=SSL_TEMPERATURE, ssl_scale=SSL_SCALE)
    out = jax.tree_util.tree_map(jax.block_until_ready, out)

    ref = _reference(image_embed, text_embed, logit_scale, aug1_embed, aug2_embed,
                     SSL_TEMPERATURE, SSL_SCALE)
    for k in out:
        np.testing.assert_allclose(np.asarray(out[k]), np.asarray(ref[k]),
                                   rtol=1e-3, atol=1e-3)
    print("KERNEL_OK")
</pallas_src>

<mosaic_0001>
module attributes {stable_mosaic.version = 11 : i64} {
  func.func @_slip_loss_kernel(%arg0: i32, %arg1: i32, %arg2: memref<8x32xbf16, #tpu.memory_space<vmem>>, %arg3: memref<8x32xbf16, #tpu.memory_space<vmem>>, %arg4: memref<8x32xbf16, #tpu.memory_space<vmem>>, %arg5: memref<8x32xbf16, #tpu.memory_space<vmem>>, %arg6: memref<8x32xbf16, #tpu.memory_space<vmem>>, %arg7: memref<8x32xbf16, #tpu.memory_space<vmem>>, %arg8: memref<8x32xbf16, #tpu.memory_space<vmem>>, %arg9: memref<8x32xbf16, #tpu.memory_space<vmem>>, %arg10: memref<1x1x128xf32, #tpu.memory_space<vmem>>, %arg11: memref<8x1xf32, #tpu.memory_space<vmem>>, %arg12: memref<8x1xf32, #tpu.memory_space<vmem>>, %arg13: memref<8x1xf32, #tpu.memory_space<vmem>>, %arg14: memref<8x1xf32, #tpu.memory_space<vmem>>, %arg15: memref<8x1xf32, #tpu.memory_space<vmem>>, %arg16: memref<8x1xf32, #tpu.memory_space<vmem>>, %arg17: memref<8x1xf32, #tpu.memory_space<vmem>>, %arg18: memref<8x1xf32, #tpu.memory_space<vmem>>, %arg19: memref<8x1xi32, #tpu.memory_space<vmem>>, %arg20: memref<8x1xi32, #tpu.memory_space<vmem>>) attributes {dimension_semantics = [#tpu.dimension_semantics<parallel>, #tpu.dimension_semantics<arbitrary>], iteration_bounds = array<i64: 1, 1>, scalar_prefetch = 0 : i64, scratch_operands = 10 : i64, tpu.core_type = #tpu.core_type<tc>, window_params = [{transform_indices = @transform_0, window_bounds = array<i64: 8, 32>}, {transform_indices = @transform_1, window_bounds = array<i64: 8, 32>}, {transform_indices = @transform_2, window_bounds = array<i64: 8, 32>}, {transform_indices = @transform_3, window_bounds = array<i64: 8, 32>}, {transform_indices = @transform_4, window_bounds = array<i64: 8, 32>}, {transform_indices = @transform_5, window_bounds = array<i64: 8, 32>}, {transform_indices = @transform_6, window_bounds = array<i64: 8, 32>}, {transform_indices = @transform_7, window_bounds = array<i64: 8, 32>}, {transform_indices = @transform_8, window_bounds = array<i64: 1, 1, 128>}]} {
    %c0 = arith.constant 0 : index
    %c0_0 = arith.constant 0 : index
    %0 = vector.load %arg2[%c0, %c0_0] : memref<8x32xbf16, #tpu.memory_space<vmem>>, vector<8x32xbf16>
    %c0_1 = arith.constant 0 : index
    %c0_2 = arith.constant 0 : index
    %1 = vector.load %arg3[%c0_1, %c0_2] : memref<8x32xbf16, #tpu.memory_space<vmem>>, vector<8x32xbf16>
    %c0_3 = arith.constant 0 : index
    %c0_4 = arith.constant 0 : index
    %2 = vector.load %arg4[%c0_3, %c0_4] : memref<8x32xbf16, #tpu.memory_space<vmem>>, vector<8x32xbf16>
    %c0_5 = arith.constant 0 : index
    %c0_6 = arith.constant 0 : index
    %3 = vector.load %arg5[%c0_5, %c0_6] : memref<8x32xbf16, #tpu.memory_space<vmem>>, vector<8x32xbf16>
    %c0_7 = arith.constant 0 : index
    %c0_8 = arith.constant 0 : index
    %4 = vector.load %arg6[%c0_7, %c0_8] : memref<8x32xbf16, #tpu.memory_space<vmem>>, vector<8x32xbf16>
    %c0_9 = arith.constant 0 : index
    %c0_10 = arith.constant 0 : index
    %5 = vector.load %arg7[%c0_9, %c0_10] : memref<8x32xbf16, #tpu.memory_space<vmem>>, vector<8x32xbf16>
    %c0_11 = arith.constant 0 : index
    %c0_12 = arith.constant 0 : index
    %6 = vector.load %arg8[%c0_11, %c0_12] : memref<8x32xbf16, #tpu.memory_space<vmem>>, vector<8x32xbf16>
    %c0_13 = arith.constant 0 : index
    %c0_14 = arith.constant 0 : index
    %7 = vector.load %arg9[%c0_13, %c0_14] : memref<8x32xbf16, #tpu.memory_space<vmem>>, vector<8x32xbf16>
    %c8_i32 = arith.constant 8 : i32
    %8 = arith.muli %arg0, %c8_i32 : i32
    %9 = tpu.iota {dimensions = array<i32: 0>} : vector<8x1xi32>
    %10 = vector.broadcast %8 : i32 to vector<8x1xi32>
    %11 = arith.addi %10, %9 : vector<8x1xi32>
    %c8_i32_15 = arith.constant 8 : i32
    %12 = arith.muli %arg1, %c8_i32_15 : i32
    %13 = tpu.iota {dimensions = array<i32: 1>} : vector<8x8xi32>
    %14 = vector.broadcast %12 : i32 to vector<8x8xi32>
    %15 = arith.addi %14, %13 : vector<8x8xi32>
    %cst = arith.constant dense<0.000000e+00> : vector<8x8xf32>
    %16 = tpu.matmul %0, %5, %cst {dimension_numbers = #tpu.dot_dimension_numbers<[1], [1], [0], [0], [0, 0, 1, 0], [], []>} : vector<8x32xbf16>, vector<8x32xbf16>, vector<8x8xf32> -> vector<8x8xf32>
    %cst_16 = arith.constant dense<0.000000e+00> : vector<8x8xf32>
    %17 = tpu.matmul %1, %4, %cst_16 {dimension_numbers = #tpu.dot_dimension_numbers<[1], [1], [0], [0], [0, 0, 1, 0], [], []>} : vector<8x32xbf16>, vector<8x32xbf16>, vector<8x8xf32> -> vector<8x8xf32>
    %cst_17 = arith.constant dense<0.000000e+00> : vector<8x8xf32>
    %18 = tpu.matmul %2, %7, %cst_17 {dimension_numbers = #tpu.dot_dimension_numbers<[1], [1], [0], [0], [0, 0, 1, 0], [], []>} : vector<8x32xbf16>, vector<8x32xbf16>, vector<8x8xf32> -> vector<8x8xf32>
    %cst_18 = arith.constant dense<0.000000e+00> : vector<8x8xf32>
    %19 = tpu.matmul %3, %6, %cst_18 {dimension_numbers = #tpu.dot_dimension_numbers<[1], [1], [0], [0], [0, 0, 1, 0], [], []>} : vector<8x32xbf16>, vector<8x32xbf16>, vector<8x8xf32> -> vector<8x8xf32>
    %cst_19 = arith.constant dense<0.000000e+00> : vector<8x8xf32>
    %20 = tpu.matmul %2, %6, %cst_19 {dimension_numbers = #tpu.dot_dimension_numbers<[1], [1], [0], [0], [0, 0, 1, 0], [], []>} : vector<8x32xbf16>, vector<8x32xbf16>, vector<8x8xf32> -> vector<8x8xf32>
    %cst_20 = arith.constant dense<0.000000e+00> : vector<8x8xf32>
    %21 = tpu.matmul %3, %7, %cst_20 {dimension_numbers = #tpu.dot_dimension_numbers<[1], [1], [0], [0], [0, 0, 1, 0], [], []>} : vector<8x32xbf16>, vector<8x32xbf16>, vector<8x8xf32> -> vector<8x8xf32>
    %c8_i32_21 = arith.constant 8 : i32
    %22 = arith.muli %arg0, %c8_i32_21 : i32
    %c8_i32_22 = arith.constant 8 : i32
    %23 = arith.muli %arg1, %c8_i32_22 : i32
    %c8_i32_23 = arith.constant 8 : i32
    %24 = arith.addi %23, %c8_i32_23 : i32
    %25 = arith.cmpi slt, %22, %24 : i32
    %c8_i32_24 = arith.constant 8 : i32
    %26 = arith.addi %22, %c8_i32_24 : i32
    %27 = arith.cmpi slt, %23, %26 : i32
    %28 = arith.andi %25, %27 : i1
    %29 = arith.extui %28 : i1 to i32
    %cst_25 = arith.constant -1.000000e+09 : f32
    %c0_i32 = arith.constant 0 : i32
    %30 = arith.cmpi ne, %29, %c0_i32 : i32
    %31:2 = scf.if %30 -> (vector<8x8xf32>, vector<8x8xf32>) {
      %161 = vector.broadcast %11 : vector<8x1xi32> to vector<8x8xi32>
      %162 = arith.cmpi eq, %161, %15 : vector<8x8xi32>
      %163 = vector.broadcast %cst_25 : f32 to vector<8x8xf32>
      %164 = arith.select %162, %163, %20 : vector<8x8xi1>, vector<8x8xf32>
      %165 = vector.broadcast %cst_25 : f32 to vector<8x8xf32>
      %166 = arith.select %162, %165, %21 : vector<8x8xi1>, vector<8x8xf32>
      scf.yield %164, %166 : vector<8x8xf32>, vector<8x8xf32>
    } else {
      scf.yield %20, %21 : vector<8x8xf32>, vector<8x8xf32>
    }
    %c0_i32_26 = arith.constant 0 : i32
    %32 = arith.cmpi eq, %arg1, %c0_i32_26 : i32
    %33 = arith.extui %32 : i1 to i32
    %c1073741824_i32 = arith.constant 1073741824 : i32
    %c0_i32_27 = arith.constant 0 : i32
    %34 = arith.cmpi ne, %33, %c0_i32_27 : i32
    scf.if %34 {
      %cst_97 = arith.constant -1.000000e+30 : f32
      %161 = vector.broadcast %cst_97 : f32 to vector<8x1xf32>
      %c0_98 = arith.constant 0 : index
      %c0_99 = arith.constant 0 : index
      %162 = vector.load %arg11[%c0_98, %c0_99] : memref<8x1xf32, #tpu.memory_space<vmem>>, vector<8x1xf32>
      tpu.vector_store %arg11[%c0_98, %c0_99], %161 {strides = array<i32>} : memref<8x1xf32, #tpu.memory_space<vmem>>, vector<8x1xf32>,
      %cst_100 = arith.constant -1.000000e+30 : f32
      %163 = vector.broadcast %cst_100 : f32 to vector<8x1xf32>
      %c0_101 = arith.constant 0 : index
      %c0_102 = arith.constant 0 : index
      %164 = vector.load %arg13[%c0_101, %c0_102] : memref<8x1xf32, #tpu.memory_space<vmem>>, vector<8x1xf32>
      tpu.vector_store %arg13[%c0_101, %c0_102], %163 {strides = array<i32>} : memref<8x1xf32, #tpu.memory_space<vmem>>, vector<8x1xf32>,
      %cst_103 = arith.constant -1.000000e+30 : f32
      %165 = vector.broadcast %cst_103 : f32 to vector<8x1xf32>
      %c0_104 = arith.constant 0 : index
      %c0_105 = arith.constant 0 : index
      %166 = vector.load %arg15[%c0_104, %c0_105] : memref<8x1xf32, #tpu.memory_space<vmem>>, vector<8x1xf32>
      tpu.vector_store %arg15[%c0_104, %c0_105], %165 {strides = array<i32>} : memref<8x1xf32, #tpu.memory_space<vmem>>, vector<8x1xf32>,
      %cst_106 = arith.constant -1.000000e+30 : f32
      %167 = vector.broadcast %cst_106 : f32 to vector<8x1xf32>
      %c0_107 = arith.constant 0 : index
      %c0_108 = arith.constant 0 : index
      %168 = vector.load %arg17[%c0_107, %c0_108] : memref<8x1xf32, #tpu.memory_space<vmem>>, vector<8x1xf32>
      tpu.vector_store %arg17[%c0_107, %c0_108], %167 {strides = array<i32>} : memref<8x1xf32, #tpu.memory_space<vmem>>, vector<8x1xf32>,
      %cst_109 = arith.constant 0.000000e+00 : f32
      %169 = vector.broadcast %cst_109 : f32 to vector<8x1xf32>
      %c0_110 = arith.constant 0 : index
      %c0_111 = arith.constant 0 : index
      %170 = vector.load %arg12[%c0_110, %c0_111] : memref<8x1xf32, #tpu.memory_space<vmem>>, vector<8x1xf32>
      tpu.vector_store %arg12[%c0_110, %c0_111], %169 {strides = array<i32>} : memref<8x1xf32, #tpu.memory_space<vmem>>, vector<8x1xf32>,
      %cst_112 = arith.constant 0.000000e+00 : f32
      %171 = vector.broadcast %cst_112 : f32 to vector<8x1xf32>
      %c0_113 = arith.constant 0 : index
      %c0_114 = arith.constant 0 : index
      %172 = vector.load %arg14[%c0_113, %c0_114] : memref<8x1xf32, #tpu.memory_space<vmem>>, vector<8x1xf32>
      tpu.vector_store %arg14[%c0_113, %c0_114], %171 {strides = array<i32>} : memref<8x1xf32, #tpu.memory_space<vmem>>, vector<8x1xf32>,
      %cst_115 = arith.constant 0.000000e+00 : f32
      %173 = vector.broadcast %cst_115 : f32 to vector<8x1xf32>
      %c0_116 = arith.constant 0 : index
      %c0_117 = arith.constant 0 : index
      %174 = vector.load %arg16[%c0_116, %c0_117] : memref<8x1xf32, #tpu.memory_space<vmem>>, vector<8x1xf32>
      tpu.vector_store %arg16[%c0_116, %c0_117], %173 {strides = array<i32>} : memref<8x1xf32, #tpu.memory_space<vmem>>, vector<8x1xf32>,
      %cst_118 = arith.constant 0.000000e+00 : f32
      %175 = vector.broadcast %cst_118 : f32 to vector<8x1xf32>
      %c0_119 = arith.constant 0 : index
      %c0_120 = arith.constant 0 : index
      %176 = vector.load %arg18[%c0_119, %c0_120] : memref<8x1xf32, #tpu.memory_space<vmem>>, vector<8x1xf32>
      tpu.vector_store %arg18[%c0_119, %c0_120], %175 {strides = array<i32>} : memref<8x1xf32, #tpu.memory_space<vmem>>, vector<8x1xf32>,
      %177 = vector.broadcast %c1073741824_i32 : i32 to vector<8x1xi32>
      %c0_121 = arith.constant 0 : index
      %c0_122 = arith.constant 0 : index
      %178 = vector.load %arg19[%c0_121, %c0_122] : memref<8x1xi32, #tpu.memory_space<vmem>>, vector<8x1xi32>
      tpu.vector_store %arg19[%c0_121, %c0_122], %177 {strides = array<i32>} : memref<8x1xi32, #tpu.memory_space<vmem>>, vector<8x1xi32>,
      %179 = vector.broadcast %c1073741824_i32 : i32 to vector<8x1xi32>
      %c0_123 = arith.constant 0 : index
      %c0_124 = arith.constant 0 : index
      %180 = vector.load %arg20[%c0_123, %c0_124] : memref<8x1xi32, #tpu.memory_space<vmem>>, vector<8x1xi32>
      tpu.vector_store %arg20[%c0_123, %c0_124], %179 {strides = array<i32>} : memref<8x1xi32, #tpu.memory_space<vmem>>, vector<8x1xi32>,
    } else {
    }
    %cst_28 = arith.constant dense<0xFF800000> : vector<8xf32>
    %35 = vector.multi_reduction <maximumf>, %16, %cst_28 [1] : vector<8x8xf32> to vector<8xf32>
    %36 = vector.shape_cast %35 : vector<8xf32> to vector<8x1xf32>
    %cst_29 = arith.constant dense<0xFF800000> : vector<8xf32>
    %37 = vector.multi_reduction <maximumf>, %17, %cst_29 [1] : vector<8x8xf32> to vector<8xf32>
    %38 = vector.shape_cast %37 : vector<8xf32> to vector<8x1xf32>
    %cst_30 = arith.constant dense<0xFF800000> : vector<8xf32>
    %39 = vector.multi_reduction <maximumf>, %18, %cst_30 [1] : vector<8x8xf32> to vector<8xf32>
    %40 = vector.shape_cast %39 : vector<8xf32> to vector<8x1xf32>
    %cst_31 = arith.constant dense<0xFF800000> : vector<8xf32>
    %41 = vector.multi_reduction <maximumf>, %31#0, %cst_31 [1] : vector<8x8xf32> to vector<8xf32>
    %42 = vector.shape_cast %41 : vector<8xf32> to vector<8x1xf32>
    %cst_32 = arith.constant dense<0xFF800000> : vector<8xf32>
    %43 = vector.multi_reduction <maximumf>, %19, %cst_32 [1] : vector<8x8xf32> to vector<8xf32>
    %44 = vector.shape_cast %43 : vector<8xf32> to vector<8x1xf32>
    %cst_33 = arith.constant dense<0xFF800000> : vector<8xf32>
    %45 = vector.multi_reduction <maximumf>, %31#1, %cst_33 [1] : vector<8x8xf32> to vector<8xf32>
    %46 = vector.shape_cast %45 : vector<8xf32> to vector<8x1xf32>
    %47 = arith.maximumf %40, %42 : vector<8x1xf32>
    %48 = arith.maximumf %44, %46 : vector<8x1xf32>
    %49 = vector.broadcast %36 : vector<8x1xf32> to vector<8x8xf32>
    %50 = arith.cmpf oeq, %16, %49 : vector<8x8xf32>
    %c1073741824_i32_34 = arith.constant 1073741824 : i32
    %51 = vector.broadcast %c1073741824_i32_34 : i32 to vector<8x8xi32>
    %52 = arith.select %50, %15, %51 : vector<8x8xi1>, vector<8x8xi32>
    %cst_35 = arith.constant dense<2147483647> : vector<8xi32>
    %53 = vector.multi_reduction <minsi>, %52, %cst_35 [1] : vector<8x8xi32> to vector<8xi32>
    %54 = vector.shape_cast %53 : vector<8xi32> to vector<8x1xi32>
    %c0_36 = arith.constant 0 : index
    %c0_37 = arith.constant 0 : index
    %55 = vector.load %arg11[%c0_36, %c0_37] : memref<8x1xf32, #tpu.memory_space<vmem>>, vector<8x1xf32>
    %56 = arith.cmpf ogt, %36, %55 : vector<8x1xf32>
    %57 = arith.cmpf oeq, %36, %55 : vector<8x1xf32>
    %c0_38 = arith.constant 0 : index
    %c0_39 = arith.constant 0 : index
    %58 = vector.load %arg19[%c0_38, %c0_39] : memref<8x1xi32, #tpu.memory_space<vmem>>, vector<8x1xi32>
    %59 = arith.cmpi slt, %54, %58 : vector<8x1xi32>
    %60 = arith.andi %57, %59 : vector<8x1xi1>
    %61 = arith.ori %56, %60 : vector<8x1xi1>
    %c0_40 = arith.constant 0 : index
    %c0_41 = arith.constant 0 : index
    %62 = vector.load %arg19[%c0_40, %c0_41] : memref<8x1xi32, #tpu.memory_space<vmem>>, vector<8x1xi32>
    %63 = arith.select %61, %54, %62 : vector<8x1xi1>, vector<8x1xi32>
    %c0_42 = arith.constant 0 : index
    %c0_43 = arith.constant 0 : index
    %64 = vector.load %arg19[%c0_42, %c0_43] : memref<8x1xi32, #tpu.memory_space<vmem>>, vector<8x1xi32>
    tpu.vector_store %arg19[%c0_42, %c0_43], %63 {strides = array<i32>} : memref<8x1xi32, #tpu.memory_space<vmem>>, vector<8x1xi32>,
    %65 = vector.broadcast %47 : vector<8x1xf32> to vector<8x8xf32>
    %66 = arith.cmpf oeq, %18, %65 : vector<8x8xf32>
    %c1073741824_i32_44 = arith.constant 1073741824 : i32
    %67 = vector.broadcast %c1073741824_i32_44 : i32 to vector<8x8xi32>
    %68 = arith.select %66, %15, %67 : vector<8x8xi1>, vector<8x8xi32>
    %cst_45 = arith.constant dense<2147483647> : vector<8xi32>
    %69 = vector.multi_reduction <minsi>, %68, %cst_45 [1] : vector<8x8xi32> to vector<8xi32>
    %70 = vector.shape_cast %69 : vector<8xi32> to vector<8x1xi32>
    %c8_i32_46 = arith.constant 8 : i32
    %71 = vector.broadcast %c8_i32_46 : i32 to vector<8x8xi32>
    %72 = arith.addi %15, %71 : vector<8x8xi32>
    %73 = vector.broadcast %47 : vector<8x1xf32> to vector<8x8xf32>
    %74 = arith.cmpf oeq, %31#0, %73 : vector<8x8xf32>
    %c1073741824_i32_47 = arith.constant 1073741824 : i32
    %75 = vector.broadcast %c1073741824_i32_47 : i32 to vector<8x8xi32>
    %76 = arith.select %74, %72, %75 : vector<8x8xi1>, vector<8x8xi32>
    %cst_48 = arith.constant dense<2147483647> : vector<8xi32>
    %77 = vector.multi_reduction <minsi>, %76, %cst_48 [1] : vector<8x8xi32> to vector<8xi32>
    %78 = vector.shape_cast %77 : vector<8xi32> to vector<8x1xi32>
    %79 = arith.minsi %70, %78 : vector<8x1xi32>
    %c0_49 = arith.constant 0 : index
    %c0_50 = arith.constant 0 : index
    %80 = vector.load %arg15[%c0_49, %c0_50] : memref<8x1xf32, #tpu.memory_space<vmem>>, vector<8x1xf32>
    %81 = arith.cmpf ogt, %47, %80 : vector<8x1xf32>
    %82 = arith.cmpf oeq, %47, %80 : vector<8x1xf32>
    %c0_51 = arith.constant 0 : index
    %c0_52 = arith.constant 0 : index
    %83 = vector.load %arg20[%c0_51, %c0_52] : memref<8x1xi32, #tpu.memory_space<vmem>>, vector<8x1xi32>
    %84 = arith.cmpi slt, %79, %83 : vector<8x1xi32>
    %85 = arith.andi %82, %84 : vector<8x1xi1>
    %86 = arith.ori %81, %85 : vector<8x1xi1>
    %c0_53 = arith.constant 0 : index
    %c0_54 = arith.constant 0 : index
    %87 = vector.load %arg20[%c0_53, %c0_54] : memref<8x1xi32, #tpu.memory_space<vmem>>, vector<8x1xi32>
    %88 = arith.select %86, %79, %87 : vector<8x1xi1>, vector<8x1xi32>
    %c0_55 = arith.constant 0 : index
    %c0_56 = arith.constant 0 : index
    %89 = vector.load %arg20[%c0_55, %c0_56] : memref<8x1xi32, #tpu.memory_space<vmem>>, vector<8x1xi32>
    tpu.vector_store %arg20[%c0_55, %c0_56], %88 {strides = array<i32>} : memref<8x1xi32, #tpu.memory_space<vmem>>, vector<8x1xi32>,
    %c0_57 = arith.constant 0 : index
    %c0_58 = arith.constant 0 : index
    %90 = vector.load %arg11[%c0_57, %c0_58] : memref<8x1xf32, #tpu.memory_space<vmem>>, vector<8x1xf32>
    %91 = arith.maximumf %90, %36 : vector<8x1xf32>
    %c0_59 = arith.constant 0 : index
    %c0_60 = arith.constant 0 : index
    %92 = vector.load %arg12[%c0_59, %c0_60] : memref<8x1xf32, #tpu.memory_space<vmem>>, vector<8x1xf32>
    %93 = arith.subf %90, %91 : vector<8x1xf32>
    %94 = math.exp %93 : vector<8x1xf32>
    %95 = arith.mulf %92, %94 : vector<8x1xf32>
    %96 = vector.broadcast %91 : vector<8x1xf32> to vector<8x8xf32>
    %97 = arith.subf %16, %96 : vector<8x8xf32>
    %98 = math.exp %97 : vector<8x8xf32>
    %cst_61 = arith.constant dense<0.000000e+00> : vector<8xf32>
    %99 = vector.multi_reduction <add>, %98, %cst_61 [1] : vector<8x8xf32> to vector<8xf32>
    %100 = vector.shape_cast %99 : vector<8xf32> to vector<8x1xf32>
    %101 = arith.addf %95, %100 : vector<8x1xf32>
    %c0_62 = arith.constant 0 : index
    %c0_63 = arith.constant 0 : index
    %102 = vector.load %arg11[%c0_62, %c0_63] : memref<8x1xf32, #tpu.memory_space<vmem>>, vector<8x1xf32>
    tpu.vector_store %arg11[%c0_62, %c0_63], %91 {strides = array<i32>} : memref<8x1xf32, #tpu.memory_space<vmem>>, vector<8x1xf32>,
    %c0_64 = arith.constant 0 : index
    %c0_65 = arith.constant 0 : index
    %103 = vector.load %arg12[%c0_64, %c0_65] : memref<8x1xf32, #tpu.memory_space<vmem>>, vector<8x1xf32>
    tpu.vector_store %arg12[%c0_64, %c0_65], %101 {strides = array<i32>} : memref<8x1xf32, #tpu.memory_space<vmem>>, vector<8x1xf32>,
    %c0_66 = arith.constant 0 : index
    %c0_67 = arith.constant 0 : index
    %104 = vector.load %arg13[%c0_66, %c0_67] : memref<8x1xf32, #tpu.memory_space<vmem>>, vector<8x1xf32>
    %105 = arith.maximumf %104, %38 : vector<8x1xf32>
    %c0_68 = arith.constant 0 : index
    %c0_69 = arith.constant 0 : index
    %106 = vector.load %arg14[%c0_68, %c0_69] : memref<8x1xf32, #tpu.memory_space<vmem>>, vector<8x1xf32>
    %107 = arith.subf %104, %105 : vector<8x1xf32>
    %108 = math.exp %107 : vector<8x1xf32>
    %109 = arith.mulf %106, %108 : vector<8x1xf32>
    %110 = vector.broadcast %105 : vector<8x1xf32> to vector<8x8xf32>
    %111 = arith.subf %17, %110 : vector<8x8xf32>
    %112 = math.exp %111 : vector<8x8xf32>
    %cst_70 = arith.constant dense<0.000000e+00> : vector<8xf32>
    %113 = vector.multi_reduction <add>, %112, %cst_70 [1] : vector<8x8xf32> to vector<8xf32>
    %114 = vector.shape_cast %113 : vector<8xf32> to vector<8x1xf32>
    %115 = arith.addf %109, %114 : vector<8x1xf32>
    %c0_71 = arith.constant 0 : index
    %c0_72 = arith.constant 0 : index
    %116 = vector.load %arg13[%c0_71, %c0_72] : memref<8x1xf32, #tpu.memory_space<vmem>>, vector<8x1xf32>
    tpu.vector_store %arg13[%c0_71, %c0_72], %105 {strides = array<i32>} : memref<8x1xf32, #tpu.memory_space<vmem>>, vector<8x1xf32>,
    %c0_73 = arith.constant 0 : index
    %c0_74 = arith.constant 0 : index
    %117 = vector.load %arg14[%c0_73, %c0_74] : memref<8x1xf32, #tpu.memory_space<vmem>>, vector<8x1xf32>
    tpu.vector_store %arg14[%c0_73, %c0_74], %115 {strides = array<i32>} : memref<8x1xf32, #tpu.memory_space<vmem>>, vector<8x1xf32>,
    %c0_75 = arith.constant 0 : index
    %c0_76 = arith.constant 0 : index
    %118 = vector.load %arg15[%c0_75, %c0_76] : memref<8x1xf32, #tpu.memory_space<vmem>>, vector<8x1xf32>
    %119 = arith.maximumf %118, %47 : vector<8x1xf32>
    %c0_77 = arith.constant 0 : index
    %c0_78 = arith.constant 0 : index
    %120 = vector.load %arg16[%c0_77, %c0_78] : memref<8x1xf32, #tpu.memory_space<vmem>>, vector<8x1xf32>
    %121 = arith.subf %118, %119 : vector<8x1xf32>
    %122 = math.exp %121 : vector<8x1xf32>
    %123 = arith.mulf %120, %122 : vector<8x1xf32>
    %124 = vector.broadcast %119 : vector<8x1xf32> to vector<8x8xf32>
    %125 = arith.subf %18, %124 : vector<8x8xf32>
    %126 = math.exp %125 : vector<8x8xf32>
    %cst_79 = arith.constant dense<0.000000e+00> : vector<8xf32>
    %127 = vector.multi_reduction <add>, %126, %cst_79 [1] : vector<8x8xf32> to vector<8xf32>
    %128 = vector.shape_cast %127 : vector<8xf32> to vector<8x1xf32>
    %129 = arith.addf %123, %128 : vector<8x1xf32>
    %130 = vector.broadcast %119 : vector<8x1xf32> to vector<8x8xf32>
    %131 = arith.subf %31#0, %130 : vector<8x8xf32>
    %132 = math.exp %131 : vector<8x8xf32>
    %cst_80 = arith.constant dense<0.000000e+00> : vector<8xf32>
    %133 = vector.multi_reduction <add>, %132, %cst_80 [1] : vector<8x8xf32> to vector<8xf32>
    %134 = vector.shape_cast %133 : vector<8xf32> to vector<8x1xf32>
    %135 = arith.addf %129, %134 : vector<8x1xf32>
    %c0_81 = arith.constant 0 : index
    %c0_82 = arith.constant 0 : index
    %136 = vector.load %arg15[%c0_81, %c0_82] : memref<8x1xf32, #tpu.memory_space<vmem>>, vector<8x1xf32>
    tpu.vector_store %arg15[%c0_81, %c0_82], %119 {strides = array<i32>} : memref<8x1xf32, #tpu.memory_space<vmem>>, vector<8x1xf32>,
    %c0_83 = arith.constant 0 : index
    %c0_84 = arith.constant 0 : index
    %137 = vector.load %arg16[%c0_83, %c0_84] : memref<8x1xf32, #tpu.memory_space<vmem>>, vector<8x1xf32>
    tpu.vector_store %arg16[%c0_83, %c0_84], %135 {strides = array<i32>} : memref<8x1xf32, #tpu.memory_space<vmem>>, vector<8x1xf32>,
    %c0_85 = arith.constant 0 : index
    %c0_86 = arith.constant 0 : index
    %138 = vector.load %arg17[%c0_85, %c0_86] : memref<8x1xf32, #tpu.memory_space<vmem>>, vector<8x1xf32>
    %139 = arith.maximumf %138, %48 : vector<8x1xf32>
    %c0_87 = arith.constant 0 : index
    %c0_88 = arith.constant 0 : index
    %140 = vector.load %arg18[%c0_87, %c0_88] : memref<8x1xf32, #tpu.memory_space<vmem>>, vector<8x1xf32>
    %141 = arith.subf %138, %139 : vector<8x1xf32>
    %142 = math.exp %141 : vector<8x1xf32>
    %143 = arith.mulf %140, %142 : vector<8x1xf32>
    %144 = vector.broadcast %139 : vector<8x1xf32> to vector<8x8xf32>
    %145 = arith.subf %19, %144 : vector<8x8xf32>
    %146 = math.exp %145 : vector<8x8xf32>
    %cst_89 = arith.constant dense<0.000000e+00> : vector<8xf32>
    %147 = vector.multi_reduction <add>, %146, %cst_89 [1] : vector<8x8xf32> to vector<8xf32>
    %148 = vector.shape_cast %147 : vector<8xf32> to vector<8x1xf32>
    %149 = arith.addf %143, %148 : vector<8x1xf32>
    %150 = vector.broadcast %139 : vector<8x1xf32> to vector<8x8xf32>
    %151 = arith.subf %31#1, %150 : vector<8x8xf32>
    %152 = math.exp %151 : vector<8x8xf32>
    %cst_90 = arith.constant dense<0.000000e+00> : vector<8xf32>
    %153 = vector.multi_reduction <add>, %152, %cst_90 [1] : vector<8x8xf32> to vector<8xf32>
    %154 = vector.shape_cast %153 : vector<8xf32> to vector<8x1xf32>
    %155 = arith.addf %149, %154 : vector<8x1xf32>
    %c0_91 = arith.constant 0 : index
    %c0_92 = arith.constant 0 : index
    %156 = vector.load %arg17[%c0_91, %c0_92] : memref<8x1xf32, #tpu.memory_space<vmem>>, vector<8x1xf32>
    tpu.vector_store %arg17[%c0_91, %c0_92], %139 {strides = array<i32>} : memref<8x1xf32, #tpu.memory_space<vmem>>, vector<8x1xf32>,
    %c0_93 = arith.constant 0 : index
    %c0_94 = arith.constant 0 : index
    %157 = vector.load %arg18[%c0_93, %c0_94] : memref<8x1xf32, #tpu.memory_space<vmem>>, vector<8x1xf32>
    tpu.vector_store %arg18[%c0_93, %c0_94], %155 {strides = array<i32>} : memref<8x1xf32, #tpu.memory_space<vmem>>, vector<8x1xf32>,
    %c0_i32_95 = arith.constant 0 : i32
    %158 = arith.cmpi eq, %arg1, %c0_i32_95 : i32
    %159 = arith.extui %158 : i1 to i32
    %c0_i32_96 = arith.constant 0 : i32
    %160 = arith.cmpi ne, %159, %c0_i32_96 : i32
    scf.if %160 {
      %161 = arith.extf %0 : vector<8x32xbf16> to vector<8x32xf32>
      %162 = arith.extf %1 : vector<8x32xbf16> to vector<8x32xf32>
      %163 = arith.mulf %161, %162 : vector<8x32xf32>
      %cst_97 = arith.constant dense<0.000000e+00> : vector<8xf32>
      %164 = vector.multi_reduction <add>, %163, %cst_97 [1] : vector<8x32xf32> to vector<8xf32>
      %165 = vector.shape_cast %164 : vector<8xf32> to vector<8x1xf32>
      %166 = arith.extf %2 : vector<8x32xbf16> to vector<8x32xf32>
      %167 = arith.extf %3 : vector<8x32xbf16> to vector<8x32xf32>
      %168 = arith.mulf %166, %167 : vector<8x32xf32>
      %cst_98 = arith.constant dense<0.000000e+00> : vector<8xf32>
      %169 = vector.multi_reduction <add>, %168, %cst_98 [1] : vector<8x32xf32> to vector<8xf32>
      %170 = vector.shape_cast %169 : vector<8xf32> to vector<8x1xf32>
      %c0_99 = arith.constant 0 : index
      %c0_100 = arith.constant 0 : index
      %171 = vector.load %arg11[%c0_99, %c0_100] : memref<8x1xf32, #tpu.memory_space<vmem>>, vector<8x1xf32>
      %c0_101 = arith.constant 0 : index
      %c0_102 = arith.constant 0 : index
      %172 = vector.load %arg12[%c0_101, %c0_102] : memref<8x1xf32, #tpu.memory_space<vmem>>, vector<8x1xf32>
      %173 = math.log %172 : vector<8x1xf32>
      %174 = arith.addf %171, %173 : vector<8x1xf32>
      %175 = arith.subf %174, %165 : vector<8x1xf32>
      %176 = vector.shape_cast %175 : vector<8x1xf32> to vector<1x8x1xf32>
      %cst_103 = arith.constant dense<0.000000e+00> : vector<1xf32>
      %177 = vector.multi_reduction <add>, %176, %cst_103 [1, 2] : vector<1x8x1xf32> to vector<1xf32>
      %178 = vector.shape_cast %177 : vector<1xf32> to vector<1x1x1xf32>
      %179 = vector.extract %178[0, 0, 0] : f32 from vector<1x1x1xf32>
      %c0_104 = arith.constant 0 : index
      %c0_105 = arith.constant 0 : index
      %180 = vector.load %arg13[%c0_104, %c0_105] : memref<8x1xf32, #tpu.memory_space<vmem>>, vector<8x1xf32>
      %c0_106 = arith.constant 0 : index
      %c0_107 = arith.constant 0 : index
      %181 = vector.load %arg14[%c0_106, %c0_107] : memref<8x1xf32, #tpu.memory_space<vmem>>, vector<8x1xf32>
      %182 = math.log %181 : vector<8x1xf32>
      %183 = arith.addf %180, %182 : vector<8x1xf32>
      %184 = arith.subf %183, %165 : vector<8x1xf32>
      %185 = vector.shape_cast %184 : vector<8x1xf32> to vector<1x8x1xf32>
      %cst_108 = arith.constant dense<0.000000e+00> : vector<1xf32>
      %186 = vector.multi_reduction <add>, %185, %cst_108 [1, 2] : vector<1x8x1xf32> to vector<1xf32>
      %187 = vector.shape_cast %186 : vector<1xf32> to vector<1x1x1xf32>
      %188 = vector.extract %187[0, 0, 0] : f32 from vector<1x1x1xf32>
      %c0_109 = arith.constant 0 : index
      %c0_110 = arith.constant 0 : index
      %189 = vector.load %arg15[%c0_109, %c0_110] : memref<8x1xf32, #tpu.memory_space<vmem>>, vector<8x1xf32>
      %c0_111 = arith.constant 0 : index
      %c0_112 = arith.constant 0 : index
      %190 = vector.load %arg16[%c0_111, %c0_112] : memref<8x1xf32, #tpu.memory_space<vmem>>, vector<8x1xf32>
      %191 = math.log %190 : vector<8x1xf32>
      %192 = arith.addf %189, %191 : vector<8x1xf32>
      %193 = arith.subf %192, %170 : vector<8x1xf32>
      %194 = vector.shape_cast %193 : vector<8x1xf32> to vector<1x8x1xf32>
      %cst_113 = arith.constant dense<0.000000e+00> : vector<1xf32>
      %195 = vector.multi_reduction <add>, %194, %cst_113 [1, 2] : vector<1x8x1xf32> to vector<1xf32>
      %196 = vector.shape_cast %195 : vector<1xf32> to vector<1x1x1xf32>
      %197 = vector.extract %196[0, 0, 0] : f32 from vector<1x1x1xf32>
      %c0_114 = arith.constant 0 : index
      %c0_115 = arith.constant 0 : index
      %198 = vector.load %arg17[%c0_114, %c0_115] : memref<8x1xf32, #tpu.memory_space<vmem>>, vector<8x1xf32>
      %c0_116 = arith.constant 0 : index
      %c0_117 = arith.constant 0 : index
      %199 = vector.load %arg18[%c0_116, %c0_117] : memref<8x1xf32, #tpu.memory_space<vmem>>, vector<8x1xf32>
      %200 = math.log %199 : vector<8x1xf32>
      %201 = arith.addf %198, %200 : vector<8x1xf32>
      %202 = arith.subf %201, %170 : vector<8x1xf32>
      %203 = vector.shape_cast %202 : vector<8x1xf32> to vector<1x8x1xf32>
      %cst_118 = arith.constant dense<0.000000e+00> : vector<1xf32>
      %204 = vector.multi_reduction <add>, %203, %cst_118 [1, 2] : vector<1x8x1xf32> to vector<1xf32>
      %205 = vector.shape_cast %204 : vector<1xf32> to vector<1x1x1xf32>
      %206 = vector.extract %205[0, 0, 0] : f32 from vector<1x1x1xf32>
      %c0_119 = arith.constant 0 : index
      %c0_120 = arith.constant 0 : index
      %207 = vector.load %arg19[%c0_119, %c0_120] : memref<8x1xi32, #tpu.memory_space<vmem>>, vector<8x1xi32>
      %208 = arith.cmpi eq, %207, %11 : vector<8x1xi32>
      %209 = arith.extui %208 : vector<8x1xi1> to vector<8x1xi32>
      %210 = arith.sitofp %209 : vector<8x1xi32> to vector<8x1xf32>
      %211 = vector.shape_cast %210 : vector<8x1xf32> to vector<1x8x1xf32>
      %cst_121 = arith.constant dense<0.000000e+00> : vector<1xf32>
      %212 = vector.multi_reduction <add>, %211, %cst_121 [1, 2] : vector<1x8x1xf32> to vector<1xf32>
      %213 = vector.shape_cast %212 : vector<1xf32> to vector<1x1x1xf32>
      %214 = vector.extract %213[0, 0, 0] : f32 from vector<1x1x1xf32>
      %c0_122 = arith.constant 0 : index
      %c0_123 = arith.constant 0 : index
      %215 = vector.load %arg20[%c0_122, %c0_123] : memref<8x1xi32, #tpu.memory_space<vmem>>, vector<8x1xi32>
      %216 = arith.cmpi eq, %215, %11 : vector<8x1xi32>
      %217 = arith.extui %216 : vector<8x1xi1> to vector<8x1xi32>
      %218 = arith.sitofp %217 : vector<8x1xi32> to vector<8x1xf32>
      %219 = vector.shape_cast %218 : vector<8x1xf32> to vector<1x8x1xf32>
      %cst_124 = arith.constant dense<0.000000e+00> : vector<1xf32>
      %220 = vector.multi_reduction <add>, %219, %cst_124 [1, 2] : vector<1x8x1xf32> to vector<1xf32>
      %221 = vector.shape_cast %220 : vector<1xf32> to vector<1x1x1xf32>
      %222 = vector.extract %221[0, 0, 0] : f32 from vector<1x1x1xf32>
      %223 = tpu.iota {dimensions = array<i32: 2>} : vector<1x1x128xi32>
      %c0_i32_125 = arith.constant 0 : i32
      %224 = vector.broadcast %c0_i32_125 : i32 to vector<1x1x128xi32>
      %225 = arith.cmpi eq, %223, %224 : vector<1x1x128xi32>
      %cst_126 = arith.constant 0.000000e+00 : f32
      %226 = vector.broadcast %179 : f32 to vector<1x1x128xf32>
      %227 = vector.broadcast %cst_126 : f32 to vector<1x1x128xf32>
      %228 = arith.select %225, %226, %227 : vector<1x1x128xi1>, vector<1x1x128xf32>
      %c1_i32 = arith.constant 1 : i32
      %229 = vector.broadcast %c1_i32 : i32 to vector<1x1x128xi32>
      %230 = arith.cmpi eq, %223, %229 : vector<1x1x128xi32>
      %cst_127 = arith.constant 0.000000e+00 : f32
      %231 = vector.broadcast %188 : f32 to vector<1x1x128xf32>
      %232 = vector.broadcast %cst_127 : f32 to vector<1x1x128xf32>
      %233 = arith.select %230, %231, %232 : vector<1x1x128xi1>, vector<1x1x128xf32>
      %234 = arith.addf %228, %233 : vector<1x1x128xf32>
      %c2_i32 = arith.constant 2 : i32
      %235 = vector.broadcast %c2_i32 : i32 to vector<1x1x128xi32>
      %236 = arith.cmpi eq, %223, %235 : vector<1x1x128xi32>
      %cst_128 = arith.constant 0.000000e+00 : f32
      %237 = vector.broadcast %214 : f32 to vector<1x1x128xf32>
      %238 = vector.broadcast %cst_128 : f32 to vector<1x1x128xf32>
      %239 = arith.select %236, %237, %238 : vector<1x1x128xi1>, vector<1x1x128xf32>
      %240 = arith.addf %234, %239 : vector<1x1x128xf32>
      %c3_i32 = arith.constant 3 : i32
      %241 = vector.broadcast %c3_i32 : i32 to vector<1x1x128xi32>
      %242 = arith.cmpi eq, %223, %241 : vector<1x1x128xi32>
      %cst_129 = arith.constant 0.000000e+00 : f32
      %243 = vector.broadcast %197 : f32 to vector<1x1x128xf32>
      %244 = vector.broadcast %cst_129 : f32 to vector<1x1x128xf32>
      %245 = arith.select %242, %243, %244 : vector<1x1x128xi1>, vector<1x1x128xf32>
      %246 = arith.addf %240, %245 : vector<1x1x128xf32>
      %c4_i32 = arith.constant 4 : i32
      %247 = vector.broadcast %c4_i32 : i32 to vector<1x1x128xi32>
      %248 = arith.cmpi eq, %223, %247 : vector<1x1x128xi32>
      %cst_130 = arith.constant 0.000000e+00 : f32
      %249 = vector.broadcast %206 : f32 to vector<1x1x128xf32>
      %250 = vector.broadcast %cst_130 : f32 to vector<1x1x128xf32>
      %251 = arith.select %248, %249, %250 : vector<1x1x128xi1>, vector<1x1x128xf32>
      %252 = arith.addf %246, %251 : vector<1x1x128xf32>
      %c5_i32 = arith.constant 5 : i32
      %253 = vector.broadcast %c5_i32 : i32 to vector<1x1x128xi32>
      %254 = arith.cmpi eq, %223, %253 : vector<1x1x128xi32>
      %cst_131 = arith.constant 0.000000e+00 : f32
      %255 = vector.broadcast %222 : f32 to vector<1x1x128xf32>
      %256 = vector.broadcast %cst_131 : f32 to vector<1x1x128xf32>
      %257 = arith.select %254, %255, %256 : vector<1x1x128xi1>, vector<1x1x128xf32>
      %258 = arith.addf %252, %257 : vector<1x1x128xf32>
      %c0_132 = arith.constant 0 : index
      %c0_133 = arith.constant 0 : index
      %c0_134 = arith.constant 0 : index
      %259 = vector.load %arg10[%c0_132, %c0_133, %c0_134] : memref<1x1x128xf32, #tpu.memory_space<vmem>>, vector<1x1x128xf32>
      tpu.vector_store %arg10[%c0_132, %c0_133, %c0_134], %258 {strides = array<i32>} : memref<1x1x128xf32, #tpu.memory_space<vmem>>, vector<1x1x128xf32>,
    } else {
    }
    return
  }
  func.func @transform_0(%arg0: i32, %arg1: i32) -> (i32, i32) {
    %c0_i32 = arith.constant 0 : i32
    %c0_i32_0 = arith.constant 0 : i32
    return %arg0, %c0_i32 : i32, i32
  }
  func.func @transform_1(%arg0: i32, %arg1: i32) -> (i32, i32) {
    %c0_i32 = arith.constant 0 : i32
    %c0_i32_0 = arith.constant 0 : i32
    return %arg0, %c0_i32 : i32, i32
  }
  func.func @transform_2(%arg0: i32, %arg1: i32) -> (i32, i32) {
    %c0_i32 = arith.constant 0 : i32
    %c0_i32_0 = arith.constant 0 : i32
    return %arg0, %c0_i32 : i32, i32
  }
  func.func @transform_3(%arg0: i32, %arg1: i32) -> (i32, i32) {
    %c0_i32 = arith.constant 0 : i32
    %c0_i32_0 = arith.constant 0 : i32
    return %arg0, %c0_i32 : i32, i32
  }
  func.func @transform_4(%arg0: i32, %arg1: i32) -> (i32, i32) {
    %c0_i32 = arith.constant 0 : i32
    %c0_i32_0 = arith.constant 0 : i32
    return %arg1, %c0_i32 : i32, i32
  }
  func.func @transform_5(%arg0: i32, %arg1: i32) -> (i32, i32) {
    %c0_i32 = arith.constant 0 : i32
    %c0_i32_0 = arith.constant 0 : i32
    return %arg1, %c0_i32 : i32, i32
  }
  func.func @transform_6(%arg0: i32, %arg1: i32) -> (i32, i32) {
    %c0_i32 = arith.constant 0 : i32
    %c0_i32_0 = arith.constant 0 : i32
    return %arg1, %c0_i32 : i32, i32
  }
  func.func @transform_7(%arg0: i32, %arg1: i32) -> (i32, i32) {
    %c0_i32 = arith.constant 0 : i32
    %c0_i32_0 = arith.constant 0 : i32
    return %arg1, %c0_i32 : i32, i32
  }
  func.func @transform_8(%arg0: i32, %arg1: i32) -> (i32, i32, i32) {
    %c0_i32 = arith.constant 0 : i32
    %c0_i32_0 = arith.constant 0 : i32
    %c0_i32_1 = arith.constant 0 : i32
    return %arg0, %c0_i32, %c0_i32_0 : i32, i32, i32
  }
}

</mosaic_0001>

<llo_original>
// kernel: tpu_custom_call.1
$region0: #{tpu_custom_call.1}
  #allocation0 [shape = 'u32[]', space=smem, size = 0x4, offset = 0x4, fixed_abs, tag = 'smem constant byte address 0x4 - core index']
  #allocation1 [shape = 'u32[144,128]{1,0:T(1,128)}', space=vmem, size = 0x12000, scoped, tag = 'internal scratch']
  #allocation2 [shape = 'f32[8,1]{1,0:T(8,128)}', space=vmem, size = 0x1000, scoped, tag = 'scratch operand']
  #allocation3 [shape = 'f32[8,1]{1,0:T(8,128)}', space=vmem, size = 0x1000, scoped, tag = 'scratch operand']
  #allocation4 [shape = 'f32[8,1]{1,0:T(8,128)}', space=vmem, size = 0x1000, scoped, tag = 'scratch operand']
  #allocation5 [shape = 'f32[8,1]{1,0:T(8,128)}', space=vmem, size = 0x1000, scoped, tag = 'scratch operand']
  #allocation6 [shape = 'f32[8,1]{1,0:T(8,128)}', space=vmem, size = 0x1000, scoped, tag = 'scratch operand']
  #allocation7 [shape = 'f32[8,1]{1,0:T(8,128)}', space=vmem, size = 0x1000, scoped, tag = 'scratch operand']
  #allocation8 [shape = 'f32[8,1]{1,0:T(8,128)}', space=vmem, size = 0x1000, scoped, tag = 'scratch operand']
  #allocation9 [shape = 'f32[8,1]{1,0:T(8,128)}', space=vmem, size = 0x1000, scoped, tag = 'scratch operand']
  #allocation10 [shape = 's32[8,1]{1,0:T(8,128)}', space=vmem, size = 0x1000, scoped, tag = 'scratch operand']
  #allocation11 [shape = 's32[8,1]{1,0:T(8,128)}', space=vmem, size = 0x1000, scoped, tag = 'scratch operand']
  %s0 = inlined_call_operand.hbm [shape: bf16[8,32], index: 0, kind: input, shape index: {}]
  %s1 = inlined_call_operand.hbm [shape: bf16[8,32], index: 1, kind: input, shape index: {}]
  %s2 = inlined_call_operand.vmem [shape: bf16[8,32], index: 2, kind: input, shape index: {}]
  %s3 = inlined_call_operand.vmem [shape: bf16[8,32], index: 3, kind: input, shape index: {}]
  %s4 = inlined_call_operand.vmem [shape: bf16[8,32], index: 4, kind: input, shape index: {}]
  %s5 = inlined_call_operand.vmem [shape: bf16[8,32], index: 5, kind: input, shape index: {}]
  %s6 = inlined_call_operand.vmem [shape: bf16[8,32], index: 6, kind: input, shape index: {}]
  %s7 = inlined_call_operand.vmem [shape: bf16[8,32], index: 7, kind: input, shape index: {}]
  %s8 = inlined_call_operand.hbm [shape: f32[1,1,128], index: 8, kind: output, shape index: {}]
  %s9 = sld [smem:[#allocation0]]
  $region66: #{tpu_custom_call.1} parent=0
    _
  %s11 = ssub.s32 1, %s9
  %s12 = scalar_select 0, %s11, %s9
  $region1: #{tpu_custom_call.1} parent=0
    #allocation12 [shape = 'u8[2048]{0}', space=vmem, size = 0x800, scoped, tag = 'input window, operand 0, single buffered']
    #allocation13 [shape = 's32[1]{0}', space=sflag, size = 0x4, scoped, tag = 'scoped memory for tpu_custom_call.1']
    #allocation14 [shape = 's32[1]{0}', space=sflag, size = 0x4, scoped, tag = 'scoped memory for tpu_custom_call.1']
    #allocation15 [shape = 'u8[2048]{0}', space=vmem, size = 0x800, scoped, tag = 'input window, operand 1, single buffered']
    #allocation16 [shape = 's32[1]{0}', space=sflag, size = 0x4, scoped, tag = 'scoped memory for tpu_custom_call.1']
    #allocation17 [shape = 'u8[512]{0}', space=vmem, size = 0x400, scoped, tag = 'output window, operand 0, single buffered']
    %13 = vsyncpa [#allocation13], 0
    %14 = vsyncpa [#allocation16], 0
    %15 = vsyncpa [#allocation14], 0
    // Predicated region
    $region2: #{tpu_custom_call.1} parent=1 // pred_check
      _
    $region3: #{tpu_custom_call.1} parent=1 // pred_check_branch
      %17 = sbr.rel (0) target = $region5
    $region4: #{tpu_custom_call.1} parent=1 // pred_region
      %s19 = ssub.s32 64, 64
      %20 = vsyncadd [#allocation13], %s19
      %s22 = sshll.u32 [#allocation12], 4
      %s23 = int_to_ptr.vmem [resolvable:$true] %s22
      %25 = dma.hbm_to_vmem [thread:$0]  %s0, 64, %s23, [#allocation13]
    $region5: #{tpu_custom_call.1} parent=1 // pred_fallthru
      _
    // Predicated region
    $region6: #{tpu_custom_call.1} parent=1 // pred_check
      _
    $region7: #{tpu_custom_call.1} parent=1 // pred_check_branch
      %27 = sbr.rel (0) target = $region9
    $region8: #{tpu_custom_call.1} parent=1 // pred_region
      %s29 = ssub.s32 64, 64
      %30 = vsyncadd [#allocation16], %s29
      %s32 = sshll.u32 [#allocation15], 4
      %s33 = int_to_ptr.vmem [resolvable:$true] %s32
      %35 = dma.hbm_to_vmem [thread:$0]  %s1, 64, %s33, [#allocation16]
    $region9: #{tpu_custom_call.1} parent=1 // pred_fallthru
      _
    // Predicated region
    $region10: #{tpu_custom_call.1} parent=1 // pred_check
      _
    $region11: #{tpu_custom_call.1} parent=1 // pred_check_branch
      %37 = sbr.rel (0) target = $region13
    $region12: #{tpu_custom_call.1} parent=1 // pred_region
      _
    $region13: #{tpu_custom_call.1} parent=1 // pred_fallthru
      _
    // Predicated region
    $region14: #{tpu_custom_call.1} parent=1 // pred_check
      _
    $region15: #{tpu_custom_call.1} parent=1 // pred_check_branch
      %39 = sbr.rel (0) target = $region17
    $region16: #{tpu_custom_call.1} parent=1 // pred_region
      _
    $region17: #{tpu_custom_call.1} parent=1 // pred_fallthru
      _
    // Predicated region
    $region18: #{tpu_custom_call.1} parent=1 // pred_check
      _
    $region19: #{tpu_custom_call.1} parent=1 // pred_check_branch
      %41 = sbr.rel (0) target = $region21
    $region20: #{tpu_custom_call.1} parent=1 // pred_region
      _
    $region21: #{tpu_custom_call.1} parent=1 // pred_fallthru
      _
    // Predicated region
    $region22: #{tpu_custom_call.1} parent=1 // pred_check
      _
    $region23: #{tpu_custom_call.1} parent=1 // pred_check_branch
      %43 = sbr.rel (0) target = $region25
    $region24: #{tpu_custom_call.1} parent=1 // pred_region
      _
    $region25: #{tpu_custom_call.1} parent=1 // pred_fallthru
      _
    // Predicated region
    $region26: #{tpu_custom_call.1} parent=1 // pred_check
      _
    $region27: #{tpu_custom_call.1} parent=1 // pred_check_branch
      %45 = sbr.rel (0) target = $region29
    $region28: #{tpu_custom_call.1} parent=1 // pred_region
      _
    $region29: #{tpu_custom_call.1} parent=1 // pred_fallthru
      _
    // Predicated region
    $region30: #{tpu_custom_call.1} parent=1 // pred_check
      _
    $region31: #{tpu_custom_call.1} parent=1 // pred_check_branch
      %47 = sbr.rel (0) target = $region33
    $region32: #{tpu_custom_call.1} parent=1 // pred_region
      _
    $region33: #{tpu_custom_call.1} parent=1 // pred_fallthru
      _
    // Predicated region
    $region34: #{tpu_custom_call.1} parent=1 // pred_check
      _
    $region35: #{tpu_custom_call.1} parent=1 // pred_check_branch
      %49 = sbr.rel (0) target = $region37
    $region36: #{tpu_custom_call.1} parent=1 // pred_region
      %50 = dma.done [#allocation13], 64
    $region37: #{tpu_custom_call.1} parent=1 // pred_fallthru
      _
    // Predicated region
    $region38: #{tpu_custom_call.1} parent=1 // pred_check
      _
    $region39: #{tpu_custom_call.1} parent=1 // pred_check_branch
      %52 = sbr.rel (0) target = $region41
    $region40: #{tpu_custom_call.1} parent=1 // pred_region
      %53 = dma.done [#allocation16], 64
    $region41: #{tpu_custom_call.1} parent=1 // pred_fallthru
      _
    %v55 = vld [vmem:[#allocation12] sm:$0xf]
    %v56 = vld [vmem:[#allocation15] sm:$0xf]
    %v57 = vld [vmem:[%s2] sm:$0xf]
    %v58 = vld [vmem:[%s3] sm:$0xf]
    %v59 = vld [vmem:[%s4] sm:$0xf]
    %v60 = vld [vmem:[%s5] sm:$0xf]
    %v61 = vld [vmem:[%s6] sm:$0xf]
    %v62 = vld [vmem:[%s7] sm:$0xf]
    %s63 = smul.u32 0, 8
    %v64 = vlaneseq
    %v65 = vshrl.u32 %v64, 7
    %v66 = vstv %s63
    %v67 = vadd.s32 %v66, %v65
    %s68 = smul.u32 0, 8
    %v69 = vlaneseq
    %v70 = vand.u32 %v69, 127
    %v71 = vstv %s68
    %v72 = vadd.s32 %v71, %v70
    %vm73 = vcmask 261120
    %v75 = vsel %vm73, %v55, 0
    %v78 = vsel %vm73, %v60, 0
    %80 = vmatprep.subr.bf16.mxu0 0
    %81 = vmatpush1.bf16.xpose.msra.mxu0 %v78
    %82 = vmatprep.subr.bf16.mxu0 0
    %83 = vmatpush1.bf16.xpose.msra.mxu0 0
    %84 = vmatprep.subr.bf16.mxu0 0
    %85 = vmatpush1.bf16.xpose.msra.mxu0 0
    %86 = vmatprep.subr.bf16.mxu0 0
    %87 = vmatpush1.bf16.xpose.msra.mxu0 0
    %88 = vmatprep.subr.bf16.mxu0 0
    %89 = vmatpush1.bf16.xpose.msra.mxu0 0
    %90 = vmatprep.subr.bf16.mxu0 0
    %91 = vmatpush1.bf16.xpose.msra.mxu0 0
    %92 = vmatprep.subr.bf16.mxu0 0
    %93 = vmatpush1.bf16.xpose.msra.mxu0 0
    %94 = vmatprep.subr.bf16.mxu0 0
    %95 = vmatpush1.bf16.xpose.msra.mxu0 0
    %96 = vmatprep.subr.bf16.mxu0 0
    %97 = vmatpush1.bf16.xpose.msra.mxu0 0
    %98 = vmatprep.subr.bf16.mxu0 0
    %99 = vmatpush1.bf16.xpose.msra.mxu0 0
    %100 = vmatprep.subr.bf16.mxu0 0
    %101 = vmatpush1.bf16.xpose.msra.mxu0 0
    %102 = vmatprep.subr.bf16.mxu0 0
    %103 = vmatpush1.bf16.xpose.msra.mxu0 0
    %104 = vmatprep.subr.bf16.mxu0 0
    %105 = vmatpush1.bf16.xpose.msra.mxu0 0
    %106 = vmatprep.subr.bf16.mxu0 0
    %107 = vmatpush1.bf16.xpose.msra.mxu0 0
    %108 = vmatprep.subr.bf16.mxu0 0
    %109 = vmatpush1.bf16.xpose.msra.mxu0 0
    %110 = vmatprep.subr.bf16.mxu0 0
    %111 = vmatpush1.bf16.xpose.msra.mxu0 0
    %112 = vmatprep.mubr.bf16.mxu0 0
    %113 = vmatmul.mubr.bf16.gmra.mrb[0].mxu0 %v75
    %v114 = vpop.f32.mrb[0].mxu0
    %v115 = vadd.f32 0.0, %v114
    %v116 = vpop.f32.mrb[0].mxu0
    %v117 = vpop.f32.mrb[0].mxu0
    %v118 = vpop.f32.mrb[0].mxu0
    %119 = vdwg.mxu0
    %v121 = vsel %vm73, %v56, 0
    %v124 = vsel %vm73, %v59, 0
    %126 = vmatprep.subr.bf16.mxu0 0
    %127 = vmatpush1.bf16.xpose.msra.mxu0 %v124
    %128 = vmatprep.subr.bf16.mxu0 0
    %129 = vmatpush1.bf16.xpose.msra.mxu0 0
    %130 = vmatprep.subr.bf16.mxu0 0
    %131 = vmatpush1.bf16.xpose.msra.mxu0 0
    %132 = vmatprep.subr.bf16.mxu0 0
    %133 = vmatpush1.bf16.xpose.msra.mxu0 0
    %134 = vmatprep.subr.bf16.mxu0 0
    %135 = vmatpush1.bf16.xpose.msra.mxu0 0
    %136 = vmatprep.subr.bf16.mxu0 0
    %137 = vmatpush1.bf16.xpose.msra.mxu0 0
    %138 = vmatprep.subr.bf16.mxu0 0
    %139 = vmatpush1.bf16.xpose.msra.mxu0 0
    %140 = vmatprep.subr.bf16.mxu0 0
    %141 = vmatpush1.bf16.xpose.msra.mxu0 0
    %142 = vmatprep.subr.bf16.mxu0 0
    %143 = vmatpush1.bf16.xpose.msra.mxu0 0
    %144 = vmatprep.subr.bf16.mxu0 0
    %145 = vmatpush1.bf16.xpose.msra.mxu0 0
    %146 = vmatprep.subr.bf16.mxu0 0
    %147 = vmatpush1.bf16.xpose.msra.mxu0 0
    %148 = vmatprep.subr.bf16.mxu0 0
    %149 = vmatpush1.bf16.xpose.msra.mxu0 0
    %150 = vmatprep.subr.bf16.mxu0 0
    %151 = vmatpush1.bf16.xpose.msra.mxu0 0
    %152 = vmatprep.subr.bf16.mxu0 0
    %153 = vmatpush1.bf16.xpose.msra.mxu0 0
    %154 = vmatprep.subr.bf16.mxu0 0
    %155 = vmatpush1.bf16.xpose.msra.mxu0 0
    %156 = vmatprep.subr.bf16.mxu0 0
    %157 = vmatpush1.bf16.xpose.msra.mxu0 0
    %158 = vmatprep.mubr.bf16.mxu0 0
    %159 = vmatmul.mubr.bf16.gmra.mrb[0].mxu0 %v121
    %v160 = vpop.f32.mrb[0].mxu0
    %v161 = vadd.f32 0.0, %v160
    %v162 = vpop.f32.mrb[0].mxu0
    %v163 = vpop.f32.mrb[0].mxu0
    %v164 = vpop.f32.mrb[0].mxu0
    %165 = vdwg.mxu0
    %v167 = vsel %vm73, %v57, 0
    %v170 = vsel %vm73, %v62, 0
    %172 = vmatprep.subr.bf16.mxu0 0
    %173 = vmatpush1.bf16.xpose.msra.mxu0 %v170
    %174 = vmatprep.subr.bf16.mxu0 0
    %175 = vmatpush1.bf16.xpose.msra.mxu0 0
    %176 = vmatprep.subr.bf16.mxu0 0
    %177 = vmatpush1.bf16.xpose.msra.mxu0 0
    %178 = vmatprep.subr.bf16.mxu0 0
    %179 = vmatpush1.bf16.xpose.msra.mxu0 0
    %180 = vmatprep.subr.bf16.mxu0 0
    %181 = vmatpush1.bf16.xpose.msra.mxu0 0
    %182 = vmatprep.subr.bf16.mxu0 0
    %183 = vmatpush1.bf16.xpose.msra.mxu0 0
    %184 = vmatprep.subr.bf16.mxu0 0
    %185 = vmatpush1.bf16.xpose.msra.mxu0 0
    %186 = vmatprep.subr.bf16.mxu0 0
    %187 = vmatpush1.bf16.xpose.msra.mxu0 0
    %188 = vmatprep.subr.bf16.mxu0 0
    %189 = vmatpush1.bf16.xpose.msra.mxu0 0
    %190 = vmatprep.subr.bf16.mxu0 0
    %191 = vmatpush1.bf16.xpose.msra.mxu0 0
    %192 = vmatprep.subr.bf16.mxu0 0
    %193 = vmatpush1.bf16.xpose.msra.mxu0 0
    %194 = vmatprep.subr.bf16.mxu0 0
    %195 = vmatpush1.bf16.xpose.msra.mxu0 0
    %196 = vmatprep.subr.bf16.mxu0 0
    %197 = vmatpush1.bf16.xpose.msra.mxu0 0
    %198 = vmatprep.subr.bf16.mxu0 0
    %199 = vmatpush1.bf16.xpose.msra.mxu0 0
    %200 = vmatprep.subr.bf16.mxu0 0
    %201 = vmatpush1.bf16.xpose.msra.mxu0 0
    %202 = vmatprep.subr.bf16.mxu0 0
    %203 = vmatpush1.bf16.xpose.msra.mxu0 0
    %204 = vmatprep.mubr.bf16.mxu0 0
    %205 = vmatmul.mubr.bf16.gmra.mrb[0].mxu0 %v167
    %v206 = vpop.f32.mrb[0].mxu0
    %v207 = vadd.f32 0.0, %v206
    %v208 = vpop.f32.mrb[0].mxu0
    %v209 = vpop.f32.mrb[0].mxu0
    %v210 = vpop.f32.mrb[0].mxu0
    %211 = vdwg.mxu0
    %v213 = vsel %vm73, %v58, 0
    %v216 = vsel %vm73, %v61, 0
    %218 = vmatprep.subr.bf16.mxu0 0
    %219 = vmatpush1.bf16.xpose.msra.mxu0 %v216
    %220 = vmatprep.subr.bf16.mxu0 0
    %221 = vmatpush1.bf16.xpose.msra.mxu0 0
    %222 = vmatprep.subr.bf16.mxu0 0
    %223 = vmatpush1.bf16.xpose.msra.mxu0 0
    %224 = vmatprep.subr.bf16.mxu0 0
    %225 = vmatpush1.bf16.xpose.msra.mxu0 0
    %226 = vmatprep.subr.bf16.mxu0 0
    %227 = vmatpush1.bf16.xpose.msra.mxu0 0
    %228 = vmatprep.subr.bf16.mxu0 0
    %229 = vmatpush1.bf16.xpose.msra.mxu0 0
    %230 = vmatprep.subr.bf16.mxu0 0
    %231 = vmatpush1.bf16.xpose.msra.mxu0 0
    %232 = vmatprep.subr.bf16.mxu0 0
    %233 = vmatpush1.bf16.xpose.msra.mxu0 0
    %234 = vmatprep.subr.bf16.mxu0 0
    %235 = vmatpush1.bf16.xpose.msra.mxu0 0
    %236 = vmatprep.subr.bf16.mxu0 0
    %237 = vmatpush1.bf16.xpose.msra.mxu0 0
    %238 = vmatprep.subr.bf16.mxu0 0
    %239 = vmatpush1.bf16.xpose.msra.mxu0 0
    %240 = vmatprep.subr.bf16.mxu0 0
    %241 = vmatpush1.bf16.xpose.msra.mxu0 0
    %242 = vmatprep.subr.bf16.mxu0 0
    %243 = vmatpush1.bf16.xpose.msra.mxu0 0
    %244 = vmatprep.subr.bf16.mxu0 0
    %245 = vmatpush1.bf16.xpose.msra.mxu0 0
    %246 = vmatprep.subr.bf16.mxu0 0
    %247 = vmatpush1.bf16.xpose.msra.mxu0 0
    %248 = vmatprep.subr.bf16.mxu0 0
    %249 = vmatpush1.bf16.xpose.msra.mxu0 0
    %250 = vmatprep.mubr.bf16.mxu0 0
    %251 = vmatmul.mubr.bf16.gmra.mrb[0].mxu0 %v213
    %v252 = vpop.f32.mrb[0].mxu0
    %v253 = vadd.f32 0.0, %v252
    %v254 = vpop.f32.mrb[0].mxu0
    %v255 = vpop.f32.mrb[0].mxu0
    %v256 = vpop.f32.mrb[0].mxu0
    %257 = vdwg.mxu0
    %258 = vmatprep.subr.bf16.mxu0 0
    %259 = vmatpush1.bf16.xpose.msra.mxu0 %v216
    %260 = vmatprep.subr.bf16.mxu0 0
    %261 = vmatpush1.bf16.xpose.msra.mxu0 0
    %262 = vmatprep.subr.bf16.mxu0 0
    %263 = vmatpush1.bf16.xpose.msra.mxu0 0
    %264 = vmatprep.subr.bf16.mxu0 0
    %265 = vmatpush1.bf16.xpose.msra.mxu0 0
    %266 = vmatprep.subr.bf16.mxu0 0
    %267 = vmatpush1.bf16.xpose.msra.mxu0 0
    %268 = vmatprep.subr.bf16.mxu0 0
    %269 = vmatpush1.bf16.xpose.msra.mxu0 0
    %270 = vmatprep.subr.bf16.mxu0 0
    %271 = vmatpush1.bf16.xpose.msra.mxu0 0
    %272 = vmatprep.subr.bf16.mxu0 0
    %273 = vmatpush1.bf16.xpose.msra.mxu0 0
    %274 = vmatprep.subr.bf16.mxu0 0
    %275 = vmatpush1.bf16.xpose.msra.mxu0 0
    %276 = vmatprep.subr.bf16.mxu0 0
    %277 = vmatpush1.bf16.xpose.msra.mxu0 0
    %278 = vmatprep.subr.bf16.mxu0 0
    %279 = vmatpush1.bf16.xpose.msra.mxu0 0
    %280 = vmatprep.subr.bf16.mxu0 0
    %281 = vmatpush1.bf16.xpose.msra.mxu0 0
    %282 = vmatprep.subr.bf16.mxu0 0
    %283 = vmatpush1.bf16.xpose.msra.mxu0 0
    %284 = vmatprep.subr.bf16.mxu0 0
    %285 = vmatpush1.bf16.xpose.msra.mxu0 0
    %286 = vmatprep.subr.bf16.mxu0 0
    %287 = vmatpush1.bf16.xpose.msra.mxu0 0
    %288 = vmatprep.subr.bf16.mxu0 0
    %289 = vmatpush1.bf16.xpose.msra.mxu0 0
    %290 = vmatprep.mubr.bf16.mxu0 0
    %291 = vmatmul.mubr.bf16.gmra.mrb[0].mxu0 %v167
    %v292 = vpop.f32.mrb[0].mxu0
    %v293 = vadd.f32 0.0, %v292
    %v294 = vpop.f32.mrb[0].mxu0
    %v295 = vpop.f32.mrb[0].mxu0
    %v296 = vpop.f32.mrb[0].mxu0
    %297 = vdwg.mxu0
    %298 = vmatprep.subr.bf16.mxu0 0
    %299 = vmatpush1.bf16.xpose.msra.mxu0 %v170
    %300 = vmatprep.subr.bf16.mxu0 0
    %301 = vmatpush1.bf16.xpose.msra.mxu0 0
    %302 = vmatprep.subr.bf16.mxu0 0
    %303 = vmatpush1.bf16.xpose.msra.mxu0 0
    %304 = vmatprep.subr.bf16.mxu0 0
    %305 = vmatpush1.bf16.xpose.msra.mxu0 0
    %306 = vmatprep.subr.bf16.mxu0 0
    %307 = vmatpush1.bf16.xpose.msra.mxu0 0
    %308 = vmatprep.subr.bf16.mxu0 0
    %309 = vmatpush1.bf16.xpose.msra.mxu0 0
    %310 = vmatprep.subr.bf16.mxu0 0
    %311 = vmatpush1.bf16.xpose.msra.mxu0 0
    %312 = vmatprep.subr.bf16.mxu0 0
    %313 = vmatpush1.bf16.xpose.msra.mxu0 0
    %314 = vmatprep.subr.bf16.mxu0 0
    %315 = vmatpush1.bf16.xpose.msra.mxu0 0
    %316 = vmatprep.subr.bf16.mxu0 0
    %317 = vmatpush1.bf16.xpose.msra.mxu0 0
    %318 = vmatprep.subr.bf16.mxu0 0
    %319 = vmatpush1.bf16.xpose.msra.mxu0 0
    %320 = vmatprep.subr.bf16.mxu0 0
    %321 = vmatpush1.bf16.xpose.msra.mxu0 0
    %322 = vmatprep.subr.bf16.mxu0 0
    %323 = vmatpush1.bf16.xpose.msra.mxu0 0
    %324 = vmatprep.subr.bf16.mxu0 0
    %325 = vmatpush1.bf16.xpose.msra.mxu0 0
    %326 = vmatprep.subr.bf16.mxu0 0
    %327 = vmatpush1.bf16.xpose.msra.mxu0 0
    %328 = vmatprep.subr.bf16.mxu0 0
    %329 = vmatpush1.bf16.xpose.msra.mxu0 0
    %330 = vmatprep.mubr.bf16.mxu0 0
    %331 = vmatmul.mubr.bf16.gmra.mrb[0].mxu0 %v213
    %v332 = vpop.f32.mrb[0].mxu0
    %v333 = vadd.f32 0.0, %v332
    %v334 = vpop.f32.mrb[0].mxu0
    %v335 = vpop.f32.mrb[0].mxu0
    %v336 = vpop.f32.mrb[0].mxu0
    %337 = vdwg.mxu0
    %s338 = sadd.s32 %s68, 8
    %p339 = scmp.lt.s32.totalorder %s63, %s338
    %s340 = sadd.s32 %s63, 8
    %p341 = scmp.lt.s32.totalorder %s68, %s340
    %p342 = pnand %p339, %p341
    %p343 = pneg %p342
    // Predicated region
    $region42: #{tpu_custom_call.1} parent=1 // pred_check
      _
    $region43: #{tpu_custom_call.1} parent=1 // pred_check_branch
      %345 = sbr.rel (%p342) target = $region45
    $region44: #{tpu_custom_call.1} parent=1 // pred_region
      %vm346 = vcmp.eq.s32.totalorder %v67, %v72
      %v347 = vsel %vm346, -1e+09, %v293
      %v348 = vsel %vm346, -1e+09, %v333
    $region45: #{tpu_custom_call.1} parent=1 // pred_fallthru
      %v349 = vphi 0, %v347
      %v350 = vphi 0, %v348
    // Predicated region
    $region46: #{tpu_custom_call.1} parent=1 // pred_check
      %p351 = pneg %p342
    $region47: #{tpu_custom_call.1} parent=1 // pred_check_branch
      %353 = sbr.rel (%p351) target = $region49
    $region48: #{tpu_custom_call.1} parent=1 // pred_region
      _
    $region49: #{tpu_custom_call.1} parent=1 // pred_fallthru
      %v354 = vphi %v349, %v293
      %v355 = vphi %v350, %v333
    %p356 = scmp.eq.s32.totalorder 0, 0
    // Predicated region
    $region50: #{tpu_custom_call.1} parent=1 // pred_check
      %p357 = pneg %p356
    $region51: #{tpu_custom_call.1} parent=1 // pred_check_branch
      %359 = sbr.rel (%p357) target = $region53
    $region52: #{tpu_custom_call.1} parent=1 // pred_region
      %vm360 = vcmask 7168
      %361 = vst.msk [vmem:[#allocation2] sm:$0xff] %vm360, -1e+30
      %362 = vst.msk [vmem:[#allocation4] sm:$0xff] %vm360, -1e+30
      %363 = vst.msk [vmem:[#allocation6] sm:$0xff] %vm360, -1e+30
      %364 = vst.msk [vmem:[#allocation8] sm:$0xff] %vm360, -1e+30
      %365 = vst.msk [vmem:[#allocation3] sm:$0xff] %vm360, 0.0
      %366 = vst.msk [vmem:[#allocation5] sm:$0xff] %vm360, 0.0
      %367 = vst.msk [vmem:[#allocation7] sm:$0xff] %vm360, 0.0
      %368 = vst.msk [vmem:[#allocation9] sm:$0xff] %vm360, 0.0
      %369 = vst.msk [vmem:[#allocation10] sm:$0xff] %vm360, 1073741824
      %370 = vst.msk [vmem:[#allocation11] sm:$0xff] %vm360, 1073741824
    $region53: #{tpu_custom_call.1} parent=1 // pred_fallthru
      _
    %vm371 = vcmask 64512
    %v372 = vsel %vm371, %v115, -inf
    %373 = vmax.xlane.f32.xlu0 %v372
    %v374 = vpop.xlane.xlu0 %373
    %v375 = vsel %vm371, %v161, -inf
    %376 = vmax.xlane.f32.xlu0 %v375
    %v377 = vpop.xlane.xlu0 %376
    %v378 = vsel %vm371, %v207, -inf
    %379 = vmax.xlane.f32.xlu0 %v378
    %v380 = vpop.xlane.xlu0 %379
    %v381 = vsel %vm371, %v354, -inf
    %382 = vmax.xlane.f32.xlu0 %v381
    %v383 = vpop.xlane.xlu0 %382
    %v384 = vsel %vm371, %v253, -inf
    %385 = vmax.xlane.f32.xlu0 %v384
    %v386 = vpop.xlane.xlu0 %385
    %v387 = vsel %vm371, %v355, -inf
    %388 = vmax.xlane.f32.xlu0 %v387
    %v389 = vpop.xlane.xlu0 %388
    %v390 = vmax.f32 %v380, %v383
    %v391 = vmax.f32 %v386, %v389
    %vm392 = vcmp.eq.f32.partialorder %v115, %v374
    %v393 = vsel %vm392, %v72, 1073741824
    %v394 = vsel %vm371, %v393, 2147483647
    %v395 = vand.u32 %v394, 65535
    %v396 = vshra.s32 %v394, 16
    %v397 = vcvt.s32.f32 %v395
    %v398 = vcvt.s32.f32 %v396
    %399 = vmin.xlane.f32.xlu0 %v398
    %v400 = vpop.xlane.xlu0 %399
    %vm401 = vcmp.eq.f32.partialorder %v398, %v400
    %v402 = vsel %vm401, %v397, inf
    %403 = vmin.xlane.f32.xlu0 %v402
    %v404 = vpop.xlane.xlu0 %403
    %v405 = vcvt.f32.s32 %v404
    %v406 = vcvt.f32.s32 %v400
    %v407 = vshll.u32 %v406, 16
    %v408 = vadd.s32 %v407, %v405
    %v409 = vld [vmem:[#allocation2] sm:$0xff]
    %vm410 = vcmp.gt.f32.partialorder %v374, %v409
    %vm411 = vcmp.eq.f32.partialorder %v374, %v409
    %v412 = vld [vmem:[#allocation10] sm:$0xff]
    %vm413 = vcmp.lt.s32.totalorder %v408, %v412
    %vm414 = vmand %vm411, %vm413
    %vm415 = vmor %vm410, %vm414
    %v416 = vsel %vm415, %v408, %v412
    %vm417 = vcmask 7168
    %418 = vst.msk [vmem:[#allocation10] sm:$0xff] %vm417, %v416
    %vm419 = vcmp.eq.f32.partialorder %v207, %v390
    %v420 = vsel %vm419, %v72, 1073741824
    %v421 = vsel %vm371, %v420, 2147483647
    %v422 = vand.u32 %v421, 65535
    %v423 = vshra.s32 %v421, 16
    %v424 = vcvt.s32.f32 %v422
    %v425 = vcvt.s32.f32 %v423
    %426 = vmin.xlane.f32.xlu0 %v425
    %v427 = vpop.xlane.xlu0 %426
    %vm428 = vcmp.eq.f32.partialorder %v425, %v427
    %v429 = vsel %vm428, %v424, inf
    %430 = vmin.xlane.f32.xlu0 %v429
    %v431 = vpop.xlane.xlu0 %430
    %v432 = vcvt.f32.s32 %v431
    %v433 = vcvt.f32.s32 %v427
    %v434 = vshll.u32 %v433, 16
    %v435 = vadd.s32 %v434, %v432
    %v436 = vadd.s32 %v72, 8
    %vm437 = vcmp.eq.f32.partialorder %v354, %v390
    %v438 = vsel %vm437, %v436, 1073741824
    %v439 = vsel %vm371, %v438, 2147483647
    %v440 = vand.u32 %v439, 65535
    %v441 = vshra.s32 %v439, 16
    %v442 = vcvt.s32.f32 %v440
    %v443 = vcvt.s32.f32 %v441
    %444 = vmin.xlane.f32.xlu0 %v443
    %v445 = vpop.xlane.xlu0 %444
    %vm446 = vcmp.eq.f32.partialorder %v443, %v445
    %v447 = vsel %vm446, %v442, inf
    %448 = vmin.xlane.f32.xlu0 %v447
    %v449 = vpop.xlane.xlu0 %448
    %v450 = vcvt.f32.s32 %v449
    %v451 = vcvt.f32.s32 %v445
    %v452 = vshll.u32 %v451, 16
    %v453 = vadd.s32 %v452, %v450
    %vm454 = vcmp.lt.s32.totalorder %v435, %v453
    %v455 = vsel %vm454, %v435, %v453
    %v456 = vld [vmem:[#allocation6] sm:$0xff]
    %vm457 = vcmp.gt.f32.partialorder %v390, %v456
    %vm458 = vcmp.eq.f32.partialorder %v390, %v456
    %v459 = vld [vmem:[#allocation11] sm:$0xff]
    %vm460 = vcmp.lt.s32.totalorder %v455, %v459
    %vm461 = vmand %vm458, %vm460
    %vm462 = vmor %vm457, %vm461
    %v463 = vsel %vm462, %v455, %v459
    %464 = vst.msk [vmem:[#allocation11] sm:$0xff] %vm417, %v463
    %v465 = vld [vmem:[#allocation2] sm:$0xff]
    %v466 = vmax.f32 %v465, %v374
    %v467 = vld [vmem:[#allocation3] sm:$0xff]
    %v468 = vsub.f32 %v465, %v466
    %v469 = vmul.f32 %v468, 1.442695
    %v470 = vpow.pop %v469
    %v471 = vmul.f32 %v467, %v470
    %473 = vset.pattern.permute.xlu0 0
    %474 = vperm.xlu0 %473, %v466
    %v475 = vpop.permute.xlu0 %474
    %v477 = vsub.f32 %v115, %v475
    %v478 = vmul.f32 %v477, 1.442695
    %v479 = vpow.pop %v478
    %v480 = vsel %vm371, %v479, 0.0
    %481 = vadd.xlane.f32.xlu0 %v480
    %v482 = vpop.xlane.xlu0 %481
    %v483 = vadd.f32 %v471, %v482
    %484 = vst.msk [vmem:[#allocation2] sm:$0xff] %vm417, %v466
    %485 = vst.msk [vmem:[#allocation3] sm:$0xff] %vm417, %v483
    %v486 = vld [vmem:[#allocation4] sm:$0xff]
    %v487 = vmax.f32 %v486, %v377
    %v488 = vld [vmem:[#allocation5] sm:$0xff]
    %v489 = vsub.f32 %v486, %v487
    %v490 = vmul.f32 %v489, 1.442695
    %v491 = vpow.pop %v490
    %v492 = vmul.f32 %v488, %v491
    %494 = vset.pattern.permute.xlu0 0
    %495 = vperm.xlu0 %494, %v487
    %v496 = vpop.permute.xlu0 %495
    %v498 = vsub.f32 %v161, %v496
    %v499 = vmul.f32 %v498, 1.442695
    %v500 = vpow.pop %v499
    %v501 = vsel %vm371, %v500, 0.0
    %502 = vadd.xlane.f32.xlu0 %v501
    %v503 = vpop.xlane.xlu0 %502
    %v504 = vadd.f32 %v492, %v503
    %505 = vst.msk [vmem:[#allocation4] sm:$0xff] %vm417, %v487
    %506 = vst.msk [vmem:[#allocation5] sm:$0xff] %vm417, %v504
    %v507 = vld [vmem:[#allocation6] sm:$0xff]
    %v508 = vmax.f32 %v507, %v390
    %v509 = vld [vmem:[#allocation7] sm:$0xff]
    %v510 = vsub.f32 %v507, %v508
    %v511 = vmul.f32 %v510, 1.442695
    %v512 = vpow.pop %v511
    %v513 = vmul.f32 %v509, %v512
    %515 = vset.pattern.permute.xlu0 0
    %516 = vperm.xlu0 %515, %v508
    %v517 = vpop.permute.xlu0 %516
    %v519 = vsub.f32 %v207, %v517
    %v520 = vmul.f32 %v519, 1.442695
    %v521 = vpow.pop %v520
    %v522 = vsel %vm371, %v521, 0.0
    %523 = vadd.xlane.f32.xlu0 %v522
    %v524 = vpop.xlane.xlu0 %523
    %v525 = vadd.f32 %v513, %v524
    %v526 = vsub.f32 %v354, %v517
    %v527 = vmul.f32 %v526, 1.442695
    %v528 = vpow.pop %v527
    %v529 = vsel %vm371, %v528, 0.0
    %530 = vadd.xlane.f32.xlu0 %v529
    %v531 = vpop.xlane.xlu0 %530
    %v532 = vadd.f32 %v525, %v531
    %533 = vst.msk [vmem:[#allocation6] sm:$0xff] %vm417, %v508
    %534 = vst.msk [vmem:[#allocation7] sm:$0xff] %vm417, %v532
    %v535 = vld [vmem:[#allocation8] sm:$0xff]
    %v536 = vmax.f32 %v535, %v391
    %v537 = vld [vmem:[#allocation9] sm:$0xff]
    %v538 = vsub.f32 %v535, %v536
    %v539 = vmul.f32 %v538, 1.442695
    %v540 = vpow.pop %v539
    %v541 = vmul.f32 %v537, %v540
    %543 = vset.pattern.permute.xlu0 0
    %544 = vperm.xlu0 %543, %v536
    %v545 = vpop.permute.xlu0 %544
    %v547 = vsub.f32 %v253, %v545
    %v548 = vmul.f32 %v547, 1.442695
    %v549 = vpow.pop %v548
    %v550 = vsel %vm371, %v549, 0.0
    %551 = vadd.xlane.f32.xlu0 %v550
    %v552 = vpop.xlane.xlu0 %551
    %v553 = vadd.f32 %v541, %v552
    %v554 = vsub.f32 %v355, %v545
    %v555 = vmul.f32 %v554, 1.442695
    %v556 = vpow.pop %v555
    %v557 = vsel %vm371, %v556, 0.0
    %558 = vadd.xlane.f32.xlu0 %v557
    %v559 = vpop.xlane.xlu0 %558
    %v560 = vadd.f32 %v553, %v559
    %561 = vst.msk [vmem:[#allocation8] sm:$0xff] %vm417, %v536
    %562 = vst.msk [vmem:[#allocation9] sm:$0xff] %vm417, %v560
    // Predicated region
    $region54: #{tpu_custom_call.1} parent=1 // pred_check
      %p563 = pneg %p356
    $region55: #{tpu_custom_call.1} parent=1 // pred_check_branch
      %565 = sbr.rel (%p563) target = $region57
    $region56: #{tpu_custom_call.1} parent=1 // pred_region
      %v566 = vunpack.c.l.bf16 %v55
      %v567 = vunpack.c.l.bf16 %v56
      %v568 = vmul.f32 %v566, %v567
      %v569 = vsel %vm73, %v568, 0.0
      %570 = vadd.xlane.f32.xlu0 %v569
      %v571 = vpop.xlane.xlu0 %570
      %v572 = vunpack.c.l.bf16 %v57
      %v573 = vunpack.c.l.bf16 %v58
      %v574 = vmul.f32 %v572, %v573
      %v575 = vsel %vm73, %v574, 0.0
      %576 = vadd.xlane.f32.xlu0 %v575
      %v577 = vpop.xlane.xlu0 %576
      %v578 = vld [vmem:[#allocation2] sm:$0xff]
      %v579 = vld [vmem:[#allocation3] sm:$0xff]
      %v580 = vlog2.pop %v579
      %v581 = vmul.f32 %v580, 0.6931472
      %v582 = vadd.f32 %v578, %v581
      %v583 = vsub.f32 %v582, %v571
      %v584 = vsel %vm417, %v583, 0.0
      %585 = vadd.xlane.f32.xlu0 %v584
      %v586 = vpop.xlane.xlu0 %585
      %v587 = vrot.slane %v586, 4
      %v588 = vadd.f32 %v586, %v587
      %v589 = vrot.slane %v588, 2
      %v590 = vadd.f32 %v588, %v589
      %v591 = vrot.slane %v590, 1
      %v592 = vadd.f32 %v590, %v591
      %s593 = vtos %v592
      %v594 = vld [vmem:[#allocation4] sm:$0xff]
      %v595 = vld [vmem:[#allocation5] sm:$0xff]
      %v596 = vlog2.pop %v595
      %v597 = vmul.f32 %v596, 0.6931472
      %v598 = vadd.f32 %v594, %v597
      %v599 = vsub.f32 %v598, %v571
      %v600 = vsel %vm417, %v599, 0.0
      %601 = vadd.xlane.f32.xlu0 %v600
      %v602 = vpop.xlane.xlu0 %601
      %v603 = vrot.slane %v602, 4
      %v604 = vadd.f32 %v602, %v603
      %v605 = vrot.slane %v604, 2
      %v606 = vadd.f32 %v604, %v605
      %v607 = vrot.slane %v606, 1
      %v608 = vadd.f32 %v606, %v607
      %s609 = vtos %v608
      %v610 = vld [vmem:[#allocation6] sm:$0xff]
      %v611 = vld [vmem:[#allocation7] sm:$0xff]
      %v612 = vlog2.pop %v611
      %v613 = vmul.f32 %v612, 0.6931472
      %v614 = vadd.f32 %v610, %v613
      %v615 = vsub.f32 %v614, %v577
      %v616 = vsel %vm417, %v615, 0.0
      %617 = vadd.xlane.f32.xlu0 %v616
      %v618 = vpop.xlane.xlu0 %617
      %v619 = vrot.slane %v618, 4
      %v620 = vadd.f32 %v618, %v619
      %v621 = vrot.slane %v620, 2
      %v622 = vadd.f32 %v620, %v621
      %v623 = vrot.slane %v622, 1
      %v624 = vadd.f32 %v622, %v623
      %s625 = vtos %v624
      %v626 = vld [vmem:[#allocation8] sm:$0xff]
      %v627 = vld [vmem:[#allocation9] sm:$0xff]
      %v628 = vlog2.pop %v627
      %v629 = vmul.f32 %v628, 0.6931472
      %v630 = vadd.f32 %v626, %v629
      %v631 = vsub.f32 %v630, %v577
      %v632 = vsel %vm417, %v631, 0.0
      %633 = vadd.xlane.f32.xlu0 %v632
      %v634 = vpop.xlane.xlu0 %633
      %v635 = vrot.slane %v634, 4
      %v636 = vadd.f32 %v634, %v635
      %v637 = vrot.slane %v636, 2
      %v638 = vadd.f32 %v636, %v637
      %v639 = vrot.slane %v638, 1
      %v640 = vadd.f32 %v638, %v639
      %s641 = vtos %v640
      %v642 = vld [vmem:[#allocation10] sm:$0xff]
      %vm643 = vcmp.eq.s32.totalorder %v642, %v67
      %v644 = vsel %vm643, 1, 0
      %v645 = vcvt.s32.f32 %v644
      %v646 = vsel %vm417, %v645, 0.0
      %647 = vadd.xlane.f32.xlu0 %v646
      %v648 = vpop.xlane.xlu0 %647
      %v649 = vrot.slane %v648, 4
      %v650 = vadd.f32 %v648, %v649
      %v651 = vrot.slane %v650, 2
      %v652 = vadd.f32 %v650, %v651
      %v653 = vrot.slane %v652, 1
      %v654 = vadd.f32 %v652, %v653
      %s655 = vtos %v654
      %v656 = vld [vmem:[#allocation11] sm:$0xff]
      %vm657 = vcmp.eq.s32.totalorder %v656, %v67
      %v658 = vsel %vm657, 1, 0
      %v659 = vcvt.s32.f32 %v658
      %v660 = vsel %vm417, %v659, 0.0
      %661 = vadd.xlane.f32.xlu0 %v660
      %v662 = vpop.xlane.xlu0 %661
      %v663 = vrot.slane %v662, 4
      %v664 = vadd.f32 %v662, %v663
      %v665 = vrot.slane %v664, 2
      %v666 = vadd.f32 %v664, %v665
      %v667 = vrot.slane %v666, 1
      %v668 = vadd.f32 %v666, %v667
      %s669 = vtos %v668
      %vm670 = vcmp.eq.s32.totalorder %v70, 0
      %v671 = vstv %s593
      %v672 = vsel %vm670, %v671, 0.0
      %vm673 = vcmp.eq.s32.totalorder %v70, 1
      %v674 = vstv %s609
      %v675 = vsel %vm673, %v674, 0.0
      %v676 = vadd.f32 %v672, %v675
      %vm677 = vcmp.eq.s32.totalorder %v70, 2
      %v678 = vstv %s655
      %v679 = vsel %vm677, %v678, 0.0
      %v680 = vadd.f32 %v676, %v679
      %vm681 = vcmp.eq.s32.totalorder %v70, 3
      %v682 = vstv %s625
      %v683 = vsel %vm681, %v682, 0.0
      %v684 = vadd.f32 %v680, %v683
      %vm685 = vcmp.eq.s32.totalorder %v70, 4
      %v686 = vstv %s641
      %v687 = vsel %vm685, %v686, 0.0
      %v688 = vadd.f32 %v684, %v687
      %vm689 = vcmp.eq.s32.totalorder %v70, 5
      %v690 = vstv %s669
      %v691 = vsel %vm689, %v690, 0.0
      %v692 = vadd.f32 %v688, %v691
      %693 = vst [vmem:[#allocation17] sm:$0x1] %v692
    $region57: #{tpu_custom_call.1} parent=1 // pred_fallthru
      _
    // Predicated region
    $region58: #{tpu_custom_call.1} parent=1 // pred_check
      _
    $region59: #{tpu_custom_call.1} parent=1 // pred_check_branch
      %695 = sbr.rel (0) target = $region61
    $region60: #{tpu_custom_call.1} parent=1 // pred_region
      %s697 = ssub.s32 16, 16
      %698 = vsyncadd [#allocation14], %s697
      %s700 = sshll.u32 [#allocation17], 4
      %s701 = int_to_ptr.vmem [resolvable:$true] %s700
      %703 = dma.vmem_to_hbm [thread:$0]  %s701, 16, %s8, [#allocation14]
    $region61: #{tpu_custom_call.1} parent=1 // pred_fallthru
      _
    // Predicated region
    $region62: #{tpu_custom_call.1} parent=1 // pred_check
      _
    $region63: #{tpu_custom_call.1} parent=1 // pred_check_branch
      %705 = sbr.rel (0) target = $region65
    $region64: #{tpu_custom_call.1} parent=1 // pred_region
      %706 = dma.done [#allocation14], 16
    $region65: #{tpu_custom_call.1} parent=1 // pred_fallthru
      _
    %707 = vsyncpa [#allocation13], 1
    %708 = vsyncpa [#allocation16], 1
    %709 = vsyncpa [#allocation14], 1

</llo_original>
